<compile_context>
chip_gen: v7x
topology: tpu7x:2x2x1
jax: 0.10.0
libtpu: 0.0.40
codegen_flags: <defaults>
</compile_context>

<pallas_src>
import functools

import jax
import jax.numpy as jnp
from jax.experimental import pallas as pl
from jax.experimental.pallas import tpu as pltpu


def _round_up(x, m):
    return ((x + m - 1) // m) * m


def _fm_kernel(idx_ref, scale_ref, base_ref, hi_ref, lo_ref, w_ref, o_ref, *,
               num_fields, vocab_pad, chunk):
    """FM forward on one batch tile.

    idx_ref   : (TB, F)       int32  offset feature ids (clipped to [0, V-1])
    scale_ref : (TB, F)       f32    NaN-gated per-field mask scales
    base_ref  : (TB, 1)       f32    F*fc_bias + linear_bias - 0.5 * sum_f ||x_f||^2
    hi_ref    : (Vpad, D)     bf16   embedding table, high bf16 half (resident)
    lo_ref    : (Vpad, D)     bf16   embedding table, low  bf16 half (resident)
    w_ref     : (1, D)        f32    FeaturesLinear weight row (resident)
    o_ref     : (TB, 1)       f32    sigmoid(linear + fm)
    """
    n_chunks = idx_ref.shape[0] // chunk
    # Lane iota over the (padded) vocab; hoisted constant.
    lanes = jax.lax.broadcasted_iota(jnp.int32, (chunk, vocab_pad), 1)

    def body(c, carry):
        off = pl.multiple_of(c * chunk, chunk)
        idx = idx_ref[pl.ds(off, chunk), :]            # (chunk, F) int32
        sc = scale_ref[pl.ds(off, chunk), :]           # (chunk, F) f32
        base = base_ref[pl.ds(off, chunk), :]          # (chunk, 1) f32

        # Scale-weighted one-hot scatter matrix:
        #   A[b, v] = sum_f scale[b, f] * [idx[b, f] == v]
        # (fields own disjoint vocab ranges, so there are no collisions).
        a = jnp.zeros((chunk, vocab_pad), jnp.float32)
        for f in range(num_fields):                    # static, small field loop
            a = a + jnp.where(idx[:, f:f + 1] == lanes, sc[:, f:f + 1], 0.0)
        a16 = a.astype(jnp.bfloat16)                   # entries are {0, 1, NaN}: exact

        # s = sum_f scale_f * e_{idx_f}  via the MXU against the resident split table.
        s = (jnp.dot(a16, hi_ref[...], preferred_element_type=jnp.float32) +
             jnp.dot(a16, lo_ref[...], preferred_element_type=jnp.float32))  # (chunk,D)

        # linear(w) + 0.5 * ||s||^2  ==  sum_d s_d * (w_d + 0.5 * s_d)
        w = w_ref[...]                                 # (1, D), sublane-broadcast
        q = jnp.sum(s * (0.5 * s + w), axis=1, keepdims=True)                # (chunk,1)
        o_ref[pl.ds(off, chunk), :] = jax.nn.sigmoid(base + q)
        return carry

    jax.lax.fori_loop(0, n_chunks, body, None)


def fm_forward(features, mask, mask_value, params, field_dims, *, tb=2048, chunk=128):
    """Wrapper: offsets, NaN-gated scale, per-vocab scalar folds, pallas_call."""
    assert tb % chunk == 0 and chunk % 8 == 0
    table = params["embedding"].astype(jnp.float32)    # (V, D)
    w = params["fc_weight"].astype(jnp.float32)        # (D,)
    fc_b = params["fc_bias"].astype(jnp.float32)
    lin_b = params["linear_bias"].astype(jnp.float32)

    B, F = features.shape
    V, D = table.shape

    offsets = jnp.concatenate(
        [jnp.zeros((1,), jnp.int32),
         jnp.cumsum(jnp.array(field_dims, jnp.int32))[:-1]])
    idx = jnp.clip(features.astype(jnp.int32) + offsets[None, :], 0, V - 1)   # (B, F)

    # NaN-gated mask scaling, faithful to the PyTorch code (pd.isnull gate): finite
    # mask values leave the row untouched; NaN values poison it.  Duplicate mask
    # indices multiply cumulatively, like the original loop.
    factors = jnp.where(jnp.isnan(mask_value), mask_value, 1.0).astype(jnp.float32)
    scale = jnp.ones((B, F), jnp.float32)
    scale = scale.at[jnp.arange(B)[:, None], mask].multiply(factors)          # (B, F)

    # Fold everything that only needs per-vocab-row scalars into one per-example
    # scalar:  base = F*fc_bias + linear_bias - 0.5 * sum_f scale_f^2 * ||e_{idx_f}||^2
    nrm = jnp.sum(table * table, axis=1)                                      # (V,)
    sq_pre = jnp.sum((scale * scale) * nrm[idx], axis=1)                      # (B,)
    base = (jnp.float32(F) * fc_b + lin_b - 0.5 * sq_pre).reshape(B, 1)

    # Resident table, padded to a multiple of 128 vocab lanes and split into two bf16
    # halves (E ~= E_hi + E_lo, ~16 mantissa bits) for the fast bf16 MXU path.
    V_pad = _round_up(V, 128)
    tbl = jnp.zeros((V_pad, D), jnp.float32).at[:V, :].set(table)
    tbl_hi = tbl.astype(jnp.bfloat16)
    tbl_lo = (tbl - tbl_hi.astype(jnp.float32)).astype(jnp.bfloat16)
    w_row = w.reshape(1, D)

    # Batch tiling: big tiles (DMA-overhead amortization), but keep >=2 grid tiles when
    # possible so v7x's two TensorCores both get work via "parallel" semantics.
    if B >= 2 * chunk:
        tb_eff = min(tb, _round_up(pl.cdiv(B, 2), chunk))
    else:
        tb_eff = tb
    TB = min(tb_eff, _round_up(B, chunk))
    n_tiles = pl.cdiv(B, TB)
    B_pad = n_tiles * TB
    if B_pad != B:
        pad = B_pad - B
        idx = jnp.pad(idx, ((0, pad), (0, 0)))
        scale = jnp.pad(scale, ((0, pad), (0, 0)))
        base = jnp.pad(base, ((0, pad), (0, 0)))

    kernel = functools.partial(_fm_kernel, num_fields=F, vocab_pad=V_pad, chunk=chunk)
    out = pl.pallas_call(
        kernel,
        out_shape=jax.ShapeDtypeStruct((B_pad, 1), jnp.float32),
        grid=(n_tiles,),
        in_specs=[
            pl.BlockSpec((TB, F), lambda i: (i, 0)),       # idx     (streamed)
            pl.BlockSpec((TB, F), lambda i: (i, 0)),       # scale   (streamed)
            pl.BlockSpec((TB, 1), lambda i: (i, 0)),       # base    (streamed)
            pl.BlockSpec((V_pad, D), lambda i: (0, 0)),    # table hi (resident)
            pl.BlockSpec((V_pad, D), lambda i: (0, 0)),    # table lo (resident)
            pl.BlockSpec((1, D), lambda i: (0, 0)),        # fc weight (resident)
        ],
        out_specs=pl.BlockSpec((TB, 1), lambda i: (i, 0)),
        compiler_params=pltpu.CompilerParams(dimension_semantics=("parallel",)),
    )(idx, scale, base, tbl_hi, tbl_lo, w_row)
    return out[:B, 0]                                      # (B,)


def fm_reference(features, mask, mask_value, params, field_dims):
    """Pure-JAX reference mirroring the PyTorch forward."""
    table = params["embedding"].astype(jnp.float32)
    w = params["fc_weight"].astype(jnp.float32)
    fc_b = params["fc_bias"]
    lin_b = params["linear_bias"]
    B, F = features.shape
    V = table.shape[0]
    offsets = jnp.concatenate(
        [jnp.zeros((1,), jnp.int32),
         jnp.cumsum(jnp.array(field_dims, jnp.int32))[:-1]])
    idx = jnp.clip(features.astype(jnp.int32) + offsets[None, :], 0, V - 1)
    x = table[idx]                                                    # (B, F, D)
    factors = jnp.where(jnp.isnan(mask_value), mask_value, 1.0)
    scale = jnp.ones((B, F), jnp.float32).at[
        jnp.arange(B)[:, None], mask].multiply(factors)
    x = x * scale[..., None]
    lin = jnp.sum(x @ w.reshape(-1, 1) + fc_b, axis=1) + lin_b        # (B, 1)
    s2 = jnp.sum(x, axis=1) ** 2
    ss = jnp.sum(x ** 2, axis=1)
    fm = 0.5 * jnp.sum(s2 - ss, axis=1, keepdims=True)                # (B, 1)
    return jax.nn.sigmoid((lin + fm)[:, 0])


if __name__ == "__main__":
    field_dims = [10, 12, 8, 10, 10, 10, 10, 10]   # 8 fields, vocab V = 80
    embed_dim = 32
    F = len(field_dims)
    V = sum(field_dims)

    key = jax.random.PRNGKey(0)
    k_emb, k_w, k_b, k_feat, k_val = jax.random.split(key, 5)

    params = {
        "embedding": jax.random.normal(k_emb, (V, embed_dim), jnp.float32) * 0.1,
        "fc_weight": jax.random.normal(k_w, (embed_dim,), jnp.float32) * 0.1,
        "fc_bias": jax.random.normal(k_b, (), jnp.float32) * 0.1,
        "linear_bias": jnp.zeros((), jnp.float32),
    }

    fwd = jax.jit(fm_forward, static_argnames=("field_dims", "tb", "chunk"))

    def make_inputs(case_id, B):
        cols = [jax.random.randint(jax.random.fold_in(k_feat, 100 * case_id + f),
                                   (B, 1), 0, field_dims[f]) for f in range(F)]
        features = jnp.concatenate(cols, axis=1).astype(jnp.int32)    # (B, F)
        mask = jnp.tile(jnp.array([[1, 3]], jnp.int32), (B, 1))       # (B, 2)
        mask_value = jax.random.uniform(jax.random.fold_in(k_val, case_id),
                                        (B, 2), jnp.float32, 0.5, 2.0)
        return features, mask, mask_value

    # Tolerance: the resident table is stored as a bf16 hi+lo split (~16 mantissa
    # bits), so kernel-vs-f32-reference error is ~1e-5; 1e-4 leaves safe margin.
    TOL = 1e-4

    # Case 0: small batch (single padded tile). Case 1: multi-tile, multi-chunk batch.
    for case_id, (B, tb) in enumerate(((8, 2048), (300, 256))):
        features, mask, mask_value = make_inputs(case_id, B)
        out = fwd(features, mask, mask_value, params,
                  field_dims=tuple(field_dims), tb=tb)
        out = jax.block_until_ready(out)
        ref = fm_reference(features, mask, mask_value, params, field_dims)
        assert out.shape == (B,)
        assert jnp.allclose(out, ref, atol=TOL, rtol=TOL), (case_id, out, ref)

    # Case 2: exercise the NaN-gated mask branch (pd.isnull in the PyTorch code):
    # a row whose mask_value is NaN is poisoned (NaN) in both kernel and reference.
    features, mask, mask_value = make_inputs(2, 8)
    mask_value = mask_value.at[0, 0].set(jnp.nan)
    out = jax.block_until_ready(
        fwd(features, mask, mask_value, params, field_dims=tuple(field_dims)))
    ref = fm_reference(features, mask, mask_value, params, field_dims)
    assert bool(jnp.isnan(out[0])) and bool(jnp.isnan(ref[0]))
    assert jnp.allclose(out, ref, atol=TOL, rtol=TOL, equal_nan=True)

    print("KERNEL_OK")
</pallas_src>

<mosaic_0001>
module attributes {stable_mosaic.version = 11 : i64} {
  func.func @_fm_kernel(%arg0: i32, %arg1: memref<128x8xi32, #tpu.memory_space<vmem>>, %arg2: memref<128x8xf32, #tpu.memory_space<vmem>>, %arg3: memref<128x1xf32, #tpu.memory_space<vmem>>, %arg4: memref<128x32xbf16, #tpu.memory_space<vmem>>, %arg5: memref<128x32xbf16, #tpu.memory_space<vmem>>, %arg6: memref<1x32xf32, #tpu.memory_space<vmem>>, %arg7: memref<128x1xf32, #tpu.memory_space<vmem>>) attributes {dimension_semantics = [#tpu.dimension_semantics<parallel>], iteration_bounds = array<i64: 1>, scalar_prefetch = 0 : i64, scratch_operands = 0 : i64, tpu.core_type = #tpu.core_type<tc>, window_params = [{transform_indices = @transform_0, window_bounds = array<i64: 128, 8>}, {transform_indices = @transform_1, window_bounds = array<i64: 128, 8>}, {transform_indices = @transform_2, window_bounds = array<i64: 128, 1>}, {pipeline_mode = #tpu.pipeline_mode<synchronous>, transform_indices = @transform_3, window_bounds = array<i64: 128, 32>}, {pipeline_mode = #tpu.pipeline_mode<synchronous>, transform_indices = @transform_4, window_bounds = array<i64: 128, 32>}, {pipeline_mode = #tpu.pipeline_mode<synchronous>, transform_indices = @transform_5, window_bounds = array<i64: 1, 32>}, {transform_indices = @transform_6, window_bounds = array<i64: 128, 1>}]} {
    %0 = tpu.iota {dimensions = array<i32: 1>} : vector<128x128xi32>
    %c0_i32 = arith.constant 0 : i32
    %c128_i32 = arith.constant 128 : i32
    %1 = arith.muli %c0_i32, %c128_i32 : i32
    %2 = tpu.assume_multiple %1, 128 : i32
    %3 = arith.index_cast %2 : i32 to index
    %c0 = arith.constant 0 : index
    %4 = vector.load %arg1[%3, %c0] : memref<128x8xi32, #tpu.memory_space<vmem>>, vector<128x8xi32>
    %5 = arith.index_cast %2 : i32 to index
    %c0_0 = arith.constant 0 : index
    %6 = vector.load %arg2[%5, %c0_0] : memref<128x8xf32, #tpu.memory_space<vmem>>, vector<128x8xf32>
    %7 = arith.index_cast %2 : i32 to index
    %c0_1 = arith.constant 0 : index
    %8 = vector.load %arg3[%7, %c0_1] : memref<128x1xf32, #tpu.memory_space<vmem>>, vector<128x1xf32>
    %cst = arith.constant 0.000000e+00 : f32
    %9 = vector.broadcast %cst : f32 to vector<128x128xf32>
    %10 = vector.extract_strided_slice %4 {offsets = [0, 0], sizes = [128, 1], strides = [1, 1]} : vector<128x8xi32> to vector<128x1xi32>
    %11 = vector.broadcast %10 : vector<128x1xi32> to vector<128x128xi32>
    %12 = arith.cmpi eq, %11, %0 : vector<128x128xi32>
    %13 = vector.extract_strided_slice %6 {offsets = [0, 0], sizes = [128, 1], strides = [1, 1]} : vector<128x8xf32> to vector<128x1xf32>
    %cst_2 = arith.constant 0.000000e+00 : f32
    %14 = vector.shape_cast %13 : vector<128x1xf32> to vector<128x1xf32>
    %15 = vector.broadcast %14 : vector<128x1xf32> to vector<128x128xf32>
    %16 = vector.broadcast %cst_2 : f32 to vector<128x128xf32>
    %17 = arith.select %12, %15, %16 : vector<128x128xi1>, vector<128x128xf32>
    %18 = arith.addf %9, %17 : vector<128x128xf32>
    %19 = vector.extract_strided_slice %4 {offsets = [0, 1], sizes = [128, 1], strides = [1, 1]} : vector<128x8xi32> to vector<128x1xi32>
    %20 = vector.broadcast %19 : vector<128x1xi32> to vector<128x128xi32>
    %21 = arith.cmpi eq, %20, %0 : vector<128x128xi32>
    %22 = vector.extract_strided_slice %6 {offsets = [0, 1], sizes = [128, 1], strides = [1, 1]} : vector<128x8xf32> to vector<128x1xf32>
    %cst_3 = arith.constant 0.000000e+00 : f32
    %23 = vector.shape_cast %22 : vector<128x1xf32> to vector<128x1xf32>
    %24 = vector.broadcast %23 : vector<128x1xf32> to vector<128x128xf32>
    %25 = vector.broadcast %cst_3 : f32 to vector<128x128xf32>
    %26 = arith.select %21, %24, %25 : vector<128x128xi1>, vector<128x128xf32>
    %27 = arith.addf %18, %26 : vector<128x128xf32>
    %28 = vector.extract_strided_slice %4 {offsets = [0, 2], sizes = [128, 1], strides = [1, 1]} : vector<128x8xi32> to vector<128x1xi32>
    %29 = vector.broadcast %28 : vector<128x1xi32> to vector<128x128xi32>
    %30 = arith.cmpi eq, %29, %0 : vector<128x128xi32>
    %31 = vector.extract_strided_slice %6 {offsets = [0, 2], sizes = [128, 1], strides = [1, 1]} : vector<128x8xf32> to vector<128x1xf32>
    %cst_4 = arith.constant 0.000000e+00 : f32
    %32 = vector.shape_cast %31 : vector<128x1xf32> to vector<128x1xf32>
    %33 = vector.broadcast %32 : vector<128x1xf32> to vector<128x128xf32>
    %34 = vector.broadcast %cst_4 : f32 to vector<128x128xf32>
    %35 = arith.select %30, %33, %34 : vector<128x128xi1>, vector<128x128xf32>
    %36 = arith.addf %27, %35 : vector<128x128xf32>
    %37 = vector.extract_strided_slice %4 {offsets = [0, 3], sizes = [128, 1], strides = [1, 1]} : vector<128x8xi32> to vector<128x1xi32>
    %38 = vector.broadcast %37 : vector<128x1xi32> to vector<128x128xi32>
    %39 = arith.cmpi eq, %38, %0 : vector<128x128xi32>
    %40 = vector.extract_strided_slice %6 {offsets = [0, 3], sizes = [128, 1], strides = [1, 1]} : vector<128x8xf32> to vector<128x1xf32>
    %cst_5 = arith.constant 0.000000e+00 : f32
    %41 = vector.shape_cast %40 : vector<128x1xf32> to vector<128x1xf32>
    %42 = vector.broadcast %41 : vector<128x1xf32> to vector<128x128xf32>
    %43 = vector.broadcast %cst_5 : f32 to vector<128x128xf32>
    %44 = arith.select %39, %42, %43 : vector<128x128xi1>, vector<128x128xf32>
    %45 = arith.addf %36, %44 : vector<128x128xf32>
    %46 = vector.extract_strided_slice %4 {offsets = [0, 4], sizes = [128, 1], strides = [1, 1]} : vector<128x8xi32> to vector<128x1xi32>
    %47 = vector.broadcast %46 : vector<128x1xi32> to vector<128x128xi32>
    %48 = arith.cmpi eq, %47, %0 : vector<128x128xi32>
    %49 = vector.extract_strided_slice %6 {offsets = [0, 4], sizes = [128, 1], strides = [1, 1]} : vector<128x8xf32> to vector<128x1xf32>
    %cst_6 = arith.constant 0.000000e+00 : f32
    %50 = vector.shape_cast %49 : vector<128x1xf32> to vector<128x1xf32>
    %51 = vector.broadcast %50 : vector<128x1xf32> to vector<128x128xf32>
    %52 = vector.broadcast %cst_6 : f32 to vector<128x128xf32>
    %53 = arith.select %48, %51, %52 : vector<128x128xi1>, vector<128x128xf32>
    %54 = arith.addf %45, %53 : vector<128x128xf32>
    %55 = vector.extract_strided_slice %4 {offsets = [0, 5], sizes = [128, 1], strides = [1, 1]} : vector<128x8xi32> to vector<128x1xi32>
    %56 = vector.broadcast %55 : vector<128x1xi32> to vector<128x128xi32>
    %57 = arith.cmpi eq, %56, %0 : vector<128x128xi32>
    %58 = vector.extract_strided_slice %6 {offsets = [0, 5], sizes = [128, 1], strides = [1, 1]} : vector<128x8xf32> to vector<128x1xf32>
    %cst_7 = arith.constant 0.000000e+00 : f32
    %59 = vector.shape_cast %58 : vector<128x1xf32> to vector<128x1xf32>
    %60 = vector.broadcast %59 : vector<128x1xf32> to vector<128x128xf32>
    %61 = vector.broadcast %cst_7 : f32 to vector<128x128xf32>
    %62 = arith.select %57, %60, %61 : vector<128x128xi1>, vector<128x128xf32>
    %63 = arith.addf %54, %62 : vector<128x128xf32>
    %64 = vector.extract_strided_slice %4 {offsets = [0, 6], sizes = [128, 1], strides = [1, 1]} : vector<128x8xi32> to vector<128x1xi32>
    %65 = vector.broadcast %64 : vector<128x1xi32> to vector<128x128xi32>
    %66 = arith.cmpi eq, %65, %0 : vector<128x128xi32>
    %67 = vector.extract_strided_slice %6 {offsets = [0, 6], sizes = [128, 1], strides = [1, 1]} : vector<128x8xf32> to vector<128x1xf32>
    %cst_8 = arith.constant 0.000000e+00 : f32
    %68 = vector.shape_cast %67 : vector<128x1xf32> to vector<128x1xf32>
    %69 = vector.broadcast %68 : vector<128x1xf32> to vector<128x128xf32>
    %70 = vector.broadcast %cst_8 : f32 to vector<128x128xf32>
    %71 = arith.select %66, %69, %70 : vector<128x128xi1>, vector<128x128xf32>
    %72 = arith.addf %63, %71 : vector<128x128xf32>
    %73 = vector.extract_strided_slice %4 {offsets = [0, 7], sizes = [128, 1], strides = [1, 1]} : vector<128x8xi32> to vector<128x1xi32>
    %74 = vector.broadcast %73 : vector<128x1xi32> to vector<128x128xi32>
    %75 = arith.cmpi eq, %74, %0 : vector<128x128xi32>
    %76 = vector.extract_strided_slice %6 {offsets = [0, 7], sizes = [128, 1], strides = [1, 1]} : vector<128x8xf32> to vector<128x1xf32>
    %cst_9 = arith.constant 0.000000e+00 : f32
    %77 = vector.shape_cast %76 : vector<128x1xf32> to vector<128x1xf32>
    %78 = vector.broadcast %77 : vector<128x1xf32> to vector<128x128xf32>
    %79 = vector.broadcast %cst_9 : f32 to vector<128x128xf32>
    %80 = arith.select %75, %78, %79 : vector<128x128xi1>, vector<128x128xf32>
    %81 = arith.addf %72, %80 : vector<128x128xf32>
    %82 = arith.truncf %81 : vector<128x128xf32> to vector<128x128xbf16>
    %c0_10 = arith.constant 0 : index
    %c0_11 = arith.constant 0 : index
    %83 = vector.load %arg4[%c0_10, %c0_11] : memref<128x32xbf16, #tpu.memory_space<vmem>>, vector<128x32xbf16>
    %cst_12 = arith.constant dense<0.000000e+00> : vector<128x32xf32>
    %84 = tpu.matmul %82, %83, %cst_12 {dimension_numbers = #tpu.dot_dimension_numbers<[1], [0], [0], [1], [0, 0, 1, 1], [], []>} : vector<128x128xbf16>, vector<128x32xbf16>, vector<128x32xf32> -> vector<128x32xf32>
    %c0_13 = arith.constant 0 : index
    %c0_14 = arith.constant 0 : index
    %85 = vector.load %arg5[%c0_13, %c0_14] : memref<128x32xbf16, #tpu.memory_space<vmem>>, vector<128x32xbf16>
    %cst_15 = arith.constant dense<0.000000e+00> : vector<128x32xf32>
    %86 = tpu.matmul %82, %85, %cst_15 {dimension_numbers = #tpu.dot_dimension_numbers<[1], [0], [0], [1], [0, 0, 1, 1], [], []>} : vector<128x128xbf16>, vector<128x32xbf16>, vector<128x32xf32> -> vector<128x32xf32>
    %87 = arith.addf %84, %86 : vector<128x32xf32>
    %c0_16 = arith.constant 0 : index
    %c0_17 = arith.constant 0 : index
    %88 = vector.load %arg6[%c0_16, %c0_17] : memref<1x32xf32, #tpu.memory_space<vmem>>, vector<1x32xf32>
    %cst_18 = arith.constant 5.000000e-01 : f32
    %89 = vector.broadcast %cst_18 : f32 to vector<128x32xf32>
    %90 = arith.mulf %89, %87 : vector<128x32xf32>
    %91 = vector.broadcast %88 : vector<1x32xf32> to vector<128x32xf32>
    %92 = arith.addf %90, %91 : vector<128x32xf32>
    %93 = arith.mulf %87, %92 : vector<128x32xf32>
    %cst_19 = arith.constant dense<0.000000e+00> : vector<128xf32>
    %94 = vector.multi_reduction <add>, %93, %cst_19 [1] : vector<128x32xf32> to vector<128xf32>
    %95 = vector.shape_cast %94 : vector<128xf32> to vector<128x1xf32>
    %96 = arith.addf %8, %95 : vector<128x1xf32>
    %97 = arith.negf %96 : vector<128x1xf32>
    %98 = math.exp %97 : vector<128x1xf32>
    %cst_20 = arith.constant 1.000000e+00 : f32
    %99 = vector.broadcast %cst_20 : f32 to vector<128x1xf32>
    %100 = arith.addf %99, %98 : vector<128x1xf32>
    %101 = arith.divf %99, %100 : vector<128x1xf32>
    %102 = arith.index_cast %2 : i32 to index
    %c0_21 = arith.constant 0 : index
    %103 = vector.load %arg7[%102, %c0_21] : memref<128x1xf32, #tpu.memory_space<vmem>>, vector<128x1xf32>
    tpu.vector_store %arg7[%102, %c0_21], %101 {strides = array<i32>} : memref<128x1xf32, #tpu.memory_space<vmem>>, vector<128x1xf32>,
    %c1_i32 = arith.constant 1 : i32
    return
  }
  func.func @transform_0(%arg0: i32) -> (i32, i32) {
    %c0_i32 = arith.constant 0 : i32
    %c0_i32_0 = arith.constant 0 : i32
    return %arg0, %c0_i32 : i32, i32
  }
  func.func @transform_1(%arg0: i32) -> (i32, i32) {
    %c0_i32 = arith.constant 0 : i32
    %c0_i32_0 = arith.constant 0 : i32
    return %arg0, %c0_i32 : i32, i32
  }
  func.func @transform_2(%arg0: i32) -> (i32, i32) {
    %c0_i32 = arith.constant 0 : i32
    %c0_i32_0 = arith.constant 0 : i32
    return %arg0, %c0_i32 : i32, i32
  }
  func.func @transform_3(%arg0: i32) -> (i32, i32) {
    %c0_i32 = arith.constant 0 : i32
    %c0_i32_0 = arith.constant 0 : i32
    %c0_i32_1 = arith.constant 0 : i32
    return %c0_i32, %c0_i32_0 : i32, i32
  }
  func.func @transform_4(%arg0: i32) -> (i32, i32) {
    %c0_i32 = arith.constant 0 : i32
    %c0_i32_0 = arith.constant 0 : i32
    %c0_i32_1 = arith.constant 0 : i32
    return %c0_i32, %c0_i32_0 : i32, i32
  }
  func.func @transform_5(%arg0: i32) -> (i32, i32) {
    %c0_i32 = arith.constant 0 : i32
    %c0_i32_0 = arith.constant 0 : i32
    %c0_i32_1 = arith.constant 0 : i32
    return %c0_i32, %c0_i32_0 : i32, i32
  }
  func.func @transform_6(%arg0: i32) -> (i32, i32) {
    %c0_i32 = arith.constant 0 : i32
    %c0_i32_0 = arith.constant 0 : i32
    return %arg0, %c0_i32 : i32, i32
  }
}

</mosaic_0001>

<llo_original>
// kernel: fm_forward.1
$region0: #{fm_forward.1}
  #allocation0 [shape = 'u32[]', space=smem, size = 0x4, offset = 0x4, fixed_abs, tag = 'smem constant byte address 0x4 - core index']
  #allocation1 [shape = 'u32[144,128]{1,0:T(1,128)}', space=vmem, size = 0x12000, scoped, tag = 'internal scratch']
  %s0 = inlined_call_operand.vmem [shape: s32[128,8], index: 0, kind: input, shape index: {}]
  %s1 = inlined_call_operand.vmem [shape: f32[128,8], index: 1, kind: input, shape index: {}]
  %s2 = inlined_call_operand.vmem [shape: f32[128,1], index: 2, kind: input, shape index: {}]
  %s3 = inlined_call_operand.vmem [shape: bf16[128,32], index: 3, kind: input, shape index: {}]
  %s4 = inlined_call_operand.vmem [shape: bf16[128,32], index: 4, kind: input, shape index: {}]
  %s5 = inlined_call_operand.vmem [shape: f32[1,32], index: 5, kind: input, shape index: {}]
  %s6 = inlined_call_operand.vmem [shape: f32[128,1], index: 6, kind: output, shape index: {}]
  %s7 = sld [smem:[#allocation0]]
  $region34: #{fm_forward.1} parent=0
    _
  %s9 = ssub.s32 1, %s7
  %s10 = scalar_select 0, %s9, %s7
  // Predicated region
  $region2: #{fm_forward.1} parent=0 // pred_check
    _
  $region3: #{fm_forward.1} parent=0 // pred_check_branch
    %12 = sbr.rel (0) target = $region5
  $region4: #{fm_forward.1} parent=0 // pred_region
    _
  $region5: #{fm_forward.1} parent=0 // pred_fallthru
    _
  // Predicated region
  $region6: #{fm_forward.1} parent=0 // pred_check
    _
  $region7: #{fm_forward.1} parent=0 // pred_check_branch
    %14 = sbr.rel (0) target = $region9
  $region8: #{fm_forward.1} parent=0 // pred_region
    _
  $region9: #{fm_forward.1} parent=0 // pred_fallthru
    _
  // Predicated region
  $region10: #{fm_forward.1} parent=0 // pred_check
    _
  $region11: #{fm_forward.1} parent=0 // pred_check_branch
    %16 = sbr.rel (0) target = $region13
  $region12: #{fm_forward.1} parent=0 // pred_region
    _
  $region13: #{fm_forward.1} parent=0 // pred_fallthru
    _
  // Predicated region
  $region14: #{fm_forward.1} parent=0 // pred_check
    _
  $region15: #{fm_forward.1} parent=0 // pred_check_branch
    %18 = sbr.rel (0) target = $region17
  $region16: #{fm_forward.1} parent=0 // pred_region
    _
  $region17: #{fm_forward.1} parent=0 // pred_fallthru
    _
  // Predicated region
  $region18: #{fm_forward.1} parent=0 // pred_check
    _
  $region19: #{fm_forward.1} parent=0 // pred_check_branch
    %20 = sbr.rel (0) target = $region21
  $region20: #{fm_forward.1} parent=0 // pred_region
    _
  $region21: #{fm_forward.1} parent=0 // pred_fallthru
    _
  // Predicated region
  $region22: #{fm_forward.1} parent=0 // pred_check
    _
  $region23: #{fm_forward.1} parent=0 // pred_check_branch
    %22 = sbr.rel (0) target = $region25
  $region24: #{fm_forward.1} parent=0 // pred_region
    _
  $region25: #{fm_forward.1} parent=0 // pred_fallthru
    _
  %v24 = vlaneseq
  %v25 = vand.u32 %v24, 127
  %v26 = vld [vmem:[%s0] sm:$0xff]
  %v27 = vld [vmem:[%s0 + $0x8] sm:$0xff]
  %v28 = vld [vmem:[%s0 + $0x10] sm:$0xff]
  %v29 = vld [vmem:[%s0 + $0x18] sm:$0xff]
  %v30 = vld [vmem:[%s0 + $0x20] sm:$0xff]
  %v31 = vld [vmem:[%s0 + $0x28] sm:$0xff]
  %v32 = vld [vmem:[%s0 + $0x30] sm:$0xff]
  %v33 = vld [vmem:[%s0 + $0x38] sm:$0xff]
  %v34 = vld [vmem:[%s0 + $0x40] sm:$0xff]
  %v35 = vld [vmem:[%s0 + $0x48] sm:$0xff]
  %v36 = vld [vmem:[%s0 + $0x50] sm:$0xff]
  %v37 = vld [vmem:[%s0 + $0x58] sm:$0xff]
  %v38 = vld [vmem:[%s0 + $0x60] sm:$0xff]
  %v39 = vld [vmem:[%s0 + $0x68] sm:$0xff]
  %v40 = vld [vmem:[%s0 + $0x70] sm:$0xff]
  %v41 = vld [vmem:[%s0 + $0x78] sm:$0xff]
  %v42 = vld [vmem:[%s1] sm:$0xff]
  %v43 = vld [vmem:[%s1 + $0x8] sm:$0xff]
  %v44 = vld [vmem:[%s1 + $0x10] sm:$0xff]
  %v45 = vld [vmem:[%s1 + $0x18] sm:$0xff]
  %v46 = vld [vmem:[%s1 + $0x20] sm:$0xff]
  %v47 = vld [vmem:[%s1 + $0x28] sm:$0xff]
  %v48 = vld [vmem:[%s1 + $0x30] sm:$0xff]
  %v49 = vld [vmem:[%s1 + $0x38] sm:$0xff]
  %v50 = vld [vmem:[%s1 + $0x40] sm:$0xff]
  %v51 = vld [vmem:[%s1 + $0x48] sm:$0xff]
  %v52 = vld [vmem:[%s1 + $0x50] sm:$0xff]
  %v53 = vld [vmem:[%s1 + $0x58] sm:$0xff]
  %v54 = vld [vmem:[%s1 + $0x60] sm:$0xff]
  %v55 = vld [vmem:[%s1 + $0x68] sm:$0xff]
  %v56 = vld [vmem:[%s1 + $0x70] sm:$0xff]
  %v57 = vld [vmem:[%s1 + $0x78] sm:$0xff]
  %v58 = vld [vmem:[%s2] sm:$0xff]
  %v59 = vld [vmem:[%s2 + $0x8] sm:$0xff]
  %v60 = vld [vmem:[%s2 + $0x10] sm:$0xff]
  %v61 = vld [vmem:[%s2 + $0x18] sm:$0xff]
  %v62 = vld [vmem:[%s2 + $0x20] sm:$0xff]
  %v63 = vld [vmem:[%s2 + $0x28] sm:$0xff]
  %v64 = vld [vmem:[%s2 + $0x30] sm:$0xff]
  %v65 = vld [vmem:[%s2 + $0x38] sm:$0xff]
  %v66 = vld [vmem:[%s2 + $0x40] sm:$0xff]
  %v67 = vld [vmem:[%s2 + $0x48] sm:$0xff]
  %v68 = vld [vmem:[%s2 + $0x50] sm:$0xff]
  %v69 = vld [vmem:[%s2 + $0x58] sm:$0xff]
  %v70 = vld [vmem:[%s2 + $0x60] sm:$0xff]
  %v71 = vld [vmem:[%s2 + $0x68] sm:$0xff]
  %v72 = vld [vmem:[%s2 + $0x70] sm:$0xff]
  %v73 = vld [vmem:[%s2 + $0x78] sm:$0xff]
  %74 = vset.pattern.permute.xlu0 0
  %75 = vperm.xlu0 %74, %v26
  %v76 = vpop.permute.xlu0 %75
  %77 = vset.pattern.permute.xlu0 0
  %78 = vperm.xlu0 %77, %v27
  %v79 = vpop.permute.xlu0 %78
  %80 = vset.pattern.permute.xlu0 0
  %81 = vperm.xlu0 %80, %v28
  %v82 = vpop.permute.xlu0 %81
  %83 = vset.pattern.permute.xlu0 0
  %84 = vperm.xlu0 %83, %v29
  %v85 = vpop.permute.xlu0 %84
  %86 = vset.pattern.permute.xlu0 0
  %87 = vperm.xlu0 %86, %v30
  %v88 = vpop.permute.xlu0 %87
  %89 = vset.pattern.permute.xlu0 0
  %90 = vperm.xlu0 %89, %v31
  %v91 = vpop.permute.xlu0 %90
  %92 = vset.pattern.permute.xlu0 0
  %93 = vperm.xlu0 %92, %v32
  %v94 = vpop.permute.xlu0 %93
  %95 = vset.pattern.permute.xlu0 0
  %96 = vperm.xlu0 %95, %v33
  %v97 = vpop.permute.xlu0 %96
  %98 = vset.pattern.permute.xlu0 0
  %99 = vperm.xlu0 %98, %v34
  %v100 = vpop.permute.xlu0 %99
  %101 = vset.pattern.permute.xlu0 0
  %102 = vperm.xlu0 %101, %v35
  %v103 = vpop.permute.xlu0 %102
  %104 = vset.pattern.permute.xlu0 0
  %105 = vperm.xlu0 %104, %v36
  %v106 = vpop.permute.xlu0 %105
  %107 = vset.pattern.permute.xlu0 0
  %108 = vperm.xlu0 %107, %v37
  %v109 = vpop.permute.xlu0 %108
  %110 = vset.pattern.permute.xlu0 0
  %111 = vperm.xlu0 %110, %v38
  %v112 = vpop.permute.xlu0 %111
  %113 = vset.pattern.permute.xlu0 0
  %114 = vperm.xlu0 %113, %v39
  %v115 = vpop.permute.xlu0 %114
  %116 = vset.pattern.permute.xlu0 0
  %117 = vperm.xlu0 %116, %v40
  %v118 = vpop.permute.xlu0 %117
  %119 = vset.pattern.permute.xlu0 0
  %120 = vperm.xlu0 %119, %v41
  %v121 = vpop.permute.xlu0 %120
  %vm122 = vcmp.eq.s32.totalorder %v76, %v25
  %vm123 = vcmp.eq.s32.totalorder %v79, %v25
  %vm124 = vcmp.eq.s32.totalorder %v82, %v25
  %vm125 = vcmp.eq.s32.totalorder %v85, %v25
  %vm126 = vcmp.eq.s32.totalorder %v88, %v25
  %vm127 = vcmp.eq.s32.totalorder %v91, %v25
  %vm128 = vcmp.eq.s32.totalorder %v94, %v25
  %vm129 = vcmp.eq.s32.totalorder %v97, %v25
  %vm130 = vcmp.eq.s32.totalorder %v100, %v25
  %vm131 = vcmp.eq.s32.totalorder %v103, %v25
  %vm132 = vcmp.eq.s32.totalorder %v106, %v25
  %vm133 = vcmp.eq.s32.totalorder %v109, %v25
  %vm134 = vcmp.eq.s32.totalorder %v112, %v25
  %vm135 = vcmp.eq.s32.totalorder %v115, %v25
  %vm136 = vcmp.eq.s32.totalorder %v118, %v25
  %vm137 = vcmp.eq.s32.totalorder %v121, %v25
  %139 = vset.pattern.permute.xlu0 0
  %140 = vperm.xlu0 %139, %v42
  %v141 = vpop.permute.xlu0 %140
  %144 = vset.pattern.permute.xlu0 0
  %145 = vperm.xlu0 %144, %v43
  %v146 = vpop.permute.xlu0 %145
  %149 = vset.pattern.permute.xlu0 0
  %150 = vperm.xlu0 %149, %v44
  %v151 = vpop.permute.xlu0 %150
  %154 = vset.pattern.permute.xlu0 0
  %155 = vperm.xlu0 %154, %v45
  %v156 = vpop.permute.xlu0 %155
  %159 = vset.pattern.permute.xlu0 0
  %160 = vperm.xlu0 %159, %v46
  %v161 = vpop.permute.xlu0 %160
  %164 = vset.pattern.permute.xlu0 0
  %165 = vperm.xlu0 %164, %v47
  %v166 = vpop.permute.xlu0 %165
  %169 = vset.pattern.permute.xlu0 0
  %170 = vperm.xlu0 %169, %v48
  %v171 = vpop.permute.xlu0 %170
  %174 = vset.pattern.permute.xlu0 0
  %175 = vperm.xlu0 %174, %v49
  %v176 = vpop.permute.xlu0 %175
  %179 = vset.pattern.permute.xlu0 0
  %180 = vperm.xlu0 %179, %v50
  %v181 = vpop.permute.xlu0 %180
  %184 = vset.pattern.permute.xlu0 0
  %185 = vperm.xlu0 %184, %v51
  %v186 = vpop.permute.xlu0 %185
  %189 = vset.pattern.permute.xlu0 0
  %190 = vperm.xlu0 %189, %v52
  %v191 = vpop.permute.xlu0 %190
  %194 = vset.pattern.permute.xlu0 0
  %195 = vperm.xlu0 %194, %v53
  %v196 = vpop.permute.xlu0 %195
  %199 = vset.pattern.permute.xlu0 0
  %200 = vperm.xlu0 %199, %v54
  %v201 = vpop.permute.xlu0 %200
  %204 = vset.pattern.permute.xlu0 0
  %205 = vperm.xlu0 %204, %v55
  %v206 = vpop.permute.xlu0 %205
  %209 = vset.pattern.permute.xlu0 0
  %210 = vperm.xlu0 %209, %v56
  %v211 = vpop.permute.xlu0 %210
  %214 = vset.pattern.permute.xlu0 0
  %215 = vperm.xlu0 %214, %v57
  %v216 = vpop.permute.xlu0 %215
  %v218 = vsel %vm122, %v141, 0.0
  %v219 = vsel %vm123, %v146, 0.0
  %v220 = vsel %vm124, %v151, 0.0
  %v221 = vsel %vm125, %v156, 0.0
  %v222 = vsel %vm126, %v161, 0.0
  %v223 = vsel %vm127, %v166, 0.0
  %v224 = vsel %vm128, %v171, 0.0
  %v225 = vsel %vm129, %v176, 0.0
  %v226 = vsel %vm130, %v181, 0.0
  %v227 = vsel %vm131, %v186, 0.0
  %v228 = vsel %vm132, %v191, 0.0
  %v229 = vsel %vm133, %v196, 0.0
  %v230 = vsel %vm134, %v201, 0.0
  %v231 = vsel %vm135, %v206, 0.0
  %v232 = vsel %vm136, %v211, 0.0
  %v233 = vsel %vm137, %v216, 0.0
  %v234 = vadd.f32 %v218, 0.0
  %v235 = vadd.f32 %v219, 0.0
  %v236 = vadd.f32 %v220, 0.0
  %v237 = vadd.f32 %v221, 0.0
  %v238 = vadd.f32 %v222, 0.0
  %v239 = vadd.f32 %v223, 0.0
  %v240 = vadd.f32 %v224, 0.0
  %v241 = vadd.f32 %v225, 0.0
  %v242 = vadd.f32 %v226, 0.0
  %v243 = vadd.f32 %v227, 0.0
  %v244 = vadd.f32 %v228, 0.0
  %v245 = vadd.f32 %v229, 0.0
  %v246 = vadd.f32 %v230, 0.0
  %v247 = vadd.f32 %v231, 0.0
  %v248 = vadd.f32 %v232, 0.0
  %v249 = vadd.f32 %v233, 0.0
  %250 = vset.pattern.permute.xlu0 1
  %251 = vperm.xlu0 %250, %v26
  %v252 = vpop.permute.xlu0 %251
  %253 = vset.pattern.permute.xlu0 1
  %254 = vperm.xlu0 %253, %v27
  %v255 = vpop.permute.xlu0 %254
  %256 = vset.pattern.permute.xlu0 1
  %257 = vperm.xlu0 %256, %v28
  %v258 = vpop.permute.xlu0 %257
  %259 = vset.pattern.permute.xlu0 1
  %260 = vperm.xlu0 %259, %v29
  %v261 = vpop.permute.xlu0 %260
  %262 = vset.pattern.permute.xlu0 1
  %263 = vperm.xlu0 %262, %v30
  %v264 = vpop.permute.xlu0 %263
  %265 = vset.pattern.permute.xlu0 1
  %266 = vperm.xlu0 %265, %v31
  %v267 = vpop.permute.xlu0 %266
  %268 = vset.pattern.permute.xlu0 1
  %269 = vperm.xlu0 %268, %v32
  %v270 = vpop.permute.xlu0 %269
  %271 = vset.pattern.permute.xlu0 1
  %272 = vperm.xlu0 %271, %v33
  %v273 = vpop.permute.xlu0 %272
  %274 = vset.pattern.permute.xlu0 1
  %275 = vperm.xlu0 %274, %v34
  %v276 = vpop.permute.xlu0 %275
  %277 = vset.pattern.permute.xlu0 1
  %278 = vperm.xlu0 %277, %v35
  %v279 = vpop.permute.xlu0 %278
  %280 = vset.pattern.permute.xlu0 1
  %281 = vperm.xlu0 %280, %v36
  %v282 = vpop.permute.xlu0 %281
  %283 = vset.pattern.permute.xlu0 1
  %284 = vperm.xlu0 %283, %v37
  %v285 = vpop.permute.xlu0 %284
  %286 = vset.pattern.permute.xlu0 1
  %287 = vperm.xlu0 %286, %v38
  %v288 = vpop.permute.xlu0 %287
  %289 = vset.pattern.permute.xlu0 1
  %290 = vperm.xlu0 %289, %v39
  %v291 = vpop.permute.xlu0 %290
  %292 = vset.pattern.permute.xlu0 1
  %293 = vperm.xlu0 %292, %v40
  %v294 = vpop.permute.xlu0 %293
  %295 = vset.pattern.permute.xlu0 1
  %296 = vperm.xlu0 %295, %v41
  %v297 = vpop.permute.xlu0 %296
  %vm298 = vcmp.eq.s32.totalorder %v252, %v25
  %vm299 = vcmp.eq.s32.totalorder %v255, %v25
  %vm300 = vcmp.eq.s32.totalorder %v258, %v25
  %vm301 = vcmp.eq.s32.totalorder %v261, %v25
  %vm302 = vcmp.eq.s32.totalorder %v264, %v25
  %vm303 = vcmp.eq.s32.totalorder %v267, %v25
  %vm304 = vcmp.eq.s32.totalorder %v270, %v25
  %vm305 = vcmp.eq.s32.totalorder %v273, %v25
  %vm306 = vcmp.eq.s32.totalorder %v276, %v25
  %vm307 = vcmp.eq.s32.totalorder %v279, %v25
  %vm308 = vcmp.eq.s32.totalorder %v282, %v25
  %vm309 = vcmp.eq.s32.totalorder %v285, %v25
  %vm310 = vcmp.eq.s32.totalorder %v288, %v25
  %vm311 = vcmp.eq.s32.totalorder %v291, %v25
  %vm312 = vcmp.eq.s32.totalorder %v294, %v25
  %vm313 = vcmp.eq.s32.totalorder %v297, %v25
  %314 = vset.pattern.permute.xlu0 1
  %315 = vperm.xlu0 %314, %v42
  %v316 = vpop.permute.xlu0 %315
  %318 = vset.pattern.permute.xlu0 1
  %319 = vperm.xlu0 %318, %v43
  %v320 = vpop.permute.xlu0 %319
  %322 = vset.pattern.permute.xlu0 1
  %323 = vperm.xlu0 %322, %v44
  %v324 = vpop.permute.xlu0 %323
  %326 = vset.pattern.permute.xlu0 1
  %327 = vperm.xlu0 %326, %v45
  %v328 = vpop.permute.xlu0 %327
  %330 = vset.pattern.permute.xlu0 1
  %331 = vperm.xlu0 %330, %v46
  %v332 = vpop.permute.xlu0 %331
  %334 = vset.pattern.permute.xlu0 1
  %335 = vperm.xlu0 %334, %v47
  %v336 = vpop.permute.xlu0 %335
  %338 = vset.pattern.permute.xlu0 1
  %339 = vperm.xlu0 %338, %v48
  %v340 = vpop.permute.xlu0 %339
  %342 = vset.pattern.permute.xlu0 1
  %343 = vperm.xlu0 %342, %v49
  %v344 = vpop.permute.xlu0 %343
  %346 = vset.pattern.permute.xlu0 1
  %347 = vperm.xlu0 %346, %v50
  %v348 = vpop.permute.xlu0 %347
  %350 = vset.pattern.permute.xlu0 1
  %351 = vperm.xlu0 %350, %v51
  %v352 = vpop.permute.xlu0 %351
  %354 = vset.pattern.permute.xlu0 1
  %355 = vperm.xlu0 %354, %v52
  %v356 = vpop.permute.xlu0 %355
  %358 = vset.pattern.permute.xlu0 1
  %359 = vperm.xlu0 %358, %v53
  %v360 = vpop.permute.xlu0 %359
  %362 = vset.pattern.permute.xlu0 1
  %363 = vperm.xlu0 %362, %v54
  %v364 = vpop.permute.xlu0 %363
  %366 = vset.pattern.permute.xlu0 1
  %367 = vperm.xlu0 %366, %v55
  %v368 = vpop.permute.xlu0 %367
  %370 = vset.pattern.permute.xlu0 1
  %371 = vperm.xlu0 %370, %v56
  %v372 = vpop.permute.xlu0 %371
  %374 = vset.pattern.permute.xlu0 1
  %375 = vperm.xlu0 %374, %v57
  %v376 = vpop.permute.xlu0 %375
  %v378 = vsel %vm298, %v316, 0.0
  %v379 = vsel %vm299, %v320, 0.0
  %v380 = vsel %vm300, %v324, 0.0
  %v381 = vsel %vm301, %v328, 0.0
  %v382 = vsel %vm302, %v332, 0.0
  %v383 = vsel %vm303, %v336, 0.0
  %v384 = vsel %vm304, %v340, 0.0
  %v385 = vsel %vm305, %v344, 0.0
  %v386 = vsel %vm306, %v348, 0.0
  %v387 = vsel %vm307, %v352, 0.0
  %v388 = vsel %vm308, %v356, 0.0
  %v389 = vsel %vm309, %v360, 0.0
  %v390 = vsel %vm310, %v364, 0.0
  %v391 = vsel %vm311, %v368, 0.0
  %v392 = vsel %vm312, %v372, 0.0
  %v393 = vsel %vm313, %v376, 0.0
  %v394 = vadd.f32 %v234, %v378
  %v395 = vadd.f32 %v235, %v379
  %v396 = vadd.f32 %v236, %v380
  %v397 = vadd.f32 %v237, %v381
  %v398 = vadd.f32 %v238, %v382
  %v399 = vadd.f32 %v239, %v383
  %v400 = vadd.f32 %v240, %v384
  %v401 = vadd.f32 %v241, %v385
  %v402 = vadd.f32 %v242, %v386
  %v403 = vadd.f32 %v243, %v387
  %v404 = vadd.f32 %v244, %v388
  %v405 = vadd.f32 %v245, %v389
  %v406 = vadd.f32 %v246, %v390
  %v407 = vadd.f32 %v247, %v391
  %v408 = vadd.f32 %v248, %v392
  %v409 = vadd.f32 %v249, %v393
  %410 = vset.pattern.permute.xlu0 2
  %411 = vperm.xlu0 %410, %v26
  %v412 = vpop.permute.xlu0 %411
  %413 = vset.pattern.permute.xlu0 2
  %414 = vperm.xlu0 %413, %v27
  %v415 = vpop.permute.xlu0 %414
  %416 = vset.pattern.permute.xlu0 2
  %417 = vperm.xlu0 %416, %v28
  %v418 = vpop.permute.xlu0 %417
  %419 = vset.pattern.permute.xlu0 2
  %420 = vperm.xlu0 %419, %v29
  %v421 = vpop.permute.xlu0 %420
  %422 = vset.pattern.permute.xlu0 2
  %423 = vperm.xlu0 %422, %v30
  %v424 = vpop.permute.xlu0 %423
  %425 = vset.pattern.permute.xlu0 2
  %426 = vperm.xlu0 %425, %v31
  %v427 = vpop.permute.xlu0 %426
  %428 = vset.pattern.permute.xlu0 2
  %429 = vperm.xlu0 %428, %v32
  %v430 = vpop.permute.xlu0 %429
  %431 = vset.pattern.permute.xlu0 2
  %432 = vperm.xlu0 %431, %v33
  %v433 = vpop.permute.xlu0 %432
  %434 = vset.pattern.permute.xlu0 2
  %435 = vperm.xlu0 %434, %v34
  %v436 = vpop.permute.xlu0 %435
  %437 = vset.pattern.permute.xlu0 2
  %438 = vperm.xlu0 %437, %v35
  %v439 = vpop.permute.xlu0 %438
  %440 = vset.pattern.permute.xlu0 2
  %441 = vperm.xlu0 %440, %v36
  %v442 = vpop.permute.xlu0 %441
  %443 = vset.pattern.permute.xlu0 2
  %444 = vperm.xlu0 %443, %v37
  %v445 = vpop.permute.xlu0 %444
  %446 = vset.pattern.permute.xlu0 2
  %447 = vperm.xlu0 %446, %v38
  %v448 = vpop.permute.xlu0 %447
  %449 = vset.pattern.permute.xlu0 2
  %450 = vperm.xlu0 %449, %v39
  %v451 = vpop.permute.xlu0 %450
  %452 = vset.pattern.permute.xlu0 2
  %453 = vperm.xlu0 %452, %v40
  %v454 = vpop.permute.xlu0 %453
  %455 = vset.pattern.permute.xlu0 2
  %456 = vperm.xlu0 %455, %v41
  %v457 = vpop.permute.xlu0 %456
  %vm458 = vcmp.eq.s32.totalorder %v412, %v25
  %vm459 = vcmp.eq.s32.totalorder %v415, %v25
  %vm460 = vcmp.eq.s32.totalorder %v418, %v25
  %vm461 = vcmp.eq.s32.totalorder %v421, %v25
  %vm462 = vcmp.eq.s32.totalorder %v424, %v25
  %vm463 = vcmp.eq.s32.totalorder %v427, %v25
  %vm464 = vcmp.eq.s32.totalorder %v430, %v25
  %vm465 = vcmp.eq.s32.totalorder %v433, %v25
  %vm466 = vcmp.eq.s32.totalorder %v436, %v25
  %vm467 = vcmp.eq.s32.totalorder %v439, %v25
  %vm468 = vcmp.eq.s32.totalorder %v442, %v25
  %vm469 = vcmp.eq.s32.totalorder %v445, %v25
  %vm470 = vcmp.eq.s32.totalorder %v448, %v25
  %vm471 = vcmp.eq.s32.totalorder %v451, %v25
  %vm472 = vcmp.eq.s32.totalorder %v454, %v25
  %vm473 = vcmp.eq.s32.totalorder %v457, %v25
  %474 = vset.pattern.permute.xlu0 2
  %475 = vperm.xlu0 %474, %v42
  %v476 = vpop.permute.xlu0 %475
  %478 = vset.pattern.permute.xlu0 2
  %479 = vperm.xlu0 %478, %v43
  %v480 = vpop.permute.xlu0 %479
  %482 = vset.pattern.permute.xlu0 2
  %483 = vperm.xlu0 %482, %v44
  %v484 = vpop.permute.xlu0 %483
  %486 = vset.pattern.permute.xlu0 2
  %487 = vperm.xlu0 %486, %v45
  %v488 = vpop.permute.xlu0 %487
  %490 = vset.pattern.permute.xlu0 2
  %491 = vperm.xlu0 %490, %v46
  %v492 = vpop.permute.xlu0 %491
  %494 = vset.pattern.permute.xlu0 2
  %495 = vperm.xlu0 %494, %v47
  %v496 = vpop.permute.xlu0 %495
  %498 = vset.pattern.permute.xlu0 2
  %499 = vperm.xlu0 %498, %v48
  %v500 = vpop.permute.xlu0 %499
  %502 = vset.pattern.permute.xlu0 2
  %503 = vperm.xlu0 %502, %v49
  %v504 = vpop.permute.xlu0 %503
  %506 = vset.pattern.permute.xlu0 2
  %507 = vperm.xlu0 %506, %v50
  %v508 = vpop.permute.xlu0 %507
  %510 = vset.pattern.permute.xlu0 2
  %511 = vperm.xlu0 %510, %v51
  %v512 = vpop.permute.xlu0 %511
  %514 = vset.pattern.permute.xlu0 2
  %515 = vperm.xlu0 %514, %v52
  %v516 = vpop.permute.xlu0 %515
  %518 = vset.pattern.permute.xlu0 2
  %519 = vperm.xlu0 %518, %v53
  %v520 = vpop.permute.xlu0 %519
  %522 = vset.pattern.permute.xlu0 2
  %523 = vperm.xlu0 %522, %v54
  %v524 = vpop.permute.xlu0 %523
  %526 = vset.pattern.permute.xlu0 2
  %527 = vperm.xlu0 %526, %v55
  %v528 = vpop.permute.xlu0 %527
  %530 = vset.pattern.permute.xlu0 2
  %531 = vperm.xlu0 %530, %v56
  %v532 = vpop.permute.xlu0 %531
  %534 = vset.pattern.permute.xlu0 2
  %535 = vperm.xlu0 %534, %v57
  %v536 = vpop.permute.xlu0 %535
  %v538 = vsel %vm458, %v476, 0.0
  %v539 = vsel %vm459, %v480, 0.0
  %v540 = vsel %vm460, %v484, 0.0
  %v541 = vsel %vm461, %v488, 0.0
  %v542 = vsel %vm462, %v492, 0.0
  %v543 = vsel %vm463, %v496, 0.0
  %v544 = vsel %vm464, %v500, 0.0
  %v545 = vsel %vm465, %v504, 0.0
  %v546 = vsel %vm466, %v508, 0.0
  %v547 = vsel %vm467, %v512, 0.0
  %v548 = vsel %vm468, %v516, 0.0
  %v549 = vsel %vm469, %v520, 0.0
  %v550 = vsel %vm470, %v524, 0.0
  %v551 = vsel %vm471, %v528, 0.0
  %v552 = vsel %vm472, %v532, 0.0
  %v553 = vsel %vm473, %v536, 0.0
  %v554 = vadd.f32 %v394, %v538
  %v555 = vadd.f32 %v395, %v539
  %v556 = vadd.f32 %v396, %v540
  %v557 = vadd.f32 %v397, %v541
  %v558 = vadd.f32 %v398, %v542
  %v559 = vadd.f32 %v399, %v543
  %v560 = vadd.f32 %v400, %v544
  %v561 = vadd.f32 %v401, %v545
  %v562 = vadd.f32 %v402, %v546
  %v563 = vadd.f32 %v403, %v547
  %v564 = vadd.f32 %v404, %v548
  %v565 = vadd.f32 %v405, %v549
  %v566 = vadd.f32 %v406, %v550
  %v567 = vadd.f32 %v407, %v551
  %v568 = vadd.f32 %v408, %v552
  %v569 = vadd.f32 %v409, %v553
  %570 = vset.pattern.permute.xlu0 3
  %571 = vperm.xlu0 %570, %v26
  %v572 = vpop.permute.xlu0 %571
  %573 = vset.pattern.permute.xlu0 3
  %574 = vperm.xlu0 %573, %v27
  %v575 = vpop.permute.xlu0 %574
  %576 = vset.pattern.permute.xlu0 3
  %577 = vperm.xlu0 %576, %v28
  %v578 = vpop.permute.xlu0 %577
  %579 = vset.pattern.permute.xlu0 3
  %580 = vperm.xlu0 %579, %v29
  %v581 = vpop.permute.xlu0 %580
  %582 = vset.pattern.permute.xlu0 3
  %583 = vperm.xlu0 %582, %v30
  %v584 = vpop.permute.xlu0 %583
  %585 = vset.pattern.permute.xlu0 3
  %586 = vperm.xlu0 %585, %v31
  %v587 = vpop.permute.xlu0 %586
  %588 = vset.pattern.permute.xlu0 3
  %589 = vperm.xlu0 %588, %v32
  %v590 = vpop.permute.xlu0 %589
  %591 = vset.pattern.permute.xlu0 3
  %592 = vperm.xlu0 %591, %v33
  %v593 = vpop.permute.xlu0 %592
  %594 = vset.pattern.permute.xlu0 3
  %595 = vperm.xlu0 %594, %v34
  %v596 = vpop.permute.xlu0 %595
  %597 = vset.pattern.permute.xlu0 3
  %598 = vperm.xlu0 %597, %v35
  %v599 = vpop.permute.xlu0 %598
  %600 = vset.pattern.permute.xlu0 3
  %601 = vperm.xlu0 %600, %v36
  %v602 = vpop.permute.xlu0 %601
  %603 = vset.pattern.permute.xlu0 3
  %604 = vperm.xlu0 %603, %v37
  %v605 = vpop.permute.xlu0 %604
  %606 = vset.pattern.permute.xlu0 3
  %607 = vperm.xlu0 %606, %v38
  %v608 = vpop.permute.xlu0 %607
  %609 = vset.pattern.permute.xlu0 3
  %610 = vperm.xlu0 %609, %v39
  %v611 = vpop.permute.xlu0 %610
  %612 = vset.pattern.permute.xlu0 3
  %613 = vperm.xlu0 %612, %v40
  %v614 = vpop.permute.xlu0 %613
  %615 = vset.pattern.permute.xlu0 3
  %616 = vperm.xlu0 %615, %v41
  %v617 = vpop.permute.xlu0 %616
  %vm618 = vcmp.eq.s32.totalorder %v572, %v25
  %vm619 = vcmp.eq.s32.totalorder %v575, %v25
  %vm620 = vcmp.eq.s32.totalorder %v578, %v25
  %vm621 = vcmp.eq.s32.totalorder %v581, %v25
  %vm622 = vcmp.eq.s32.totalorder %v584, %v25
  %vm623 = vcmp.eq.s32.totalorder %v587, %v25
  %vm624 = vcmp.eq.s32.totalorder %v590, %v25
  %vm625 = vcmp.eq.s32.totalorder %v593, %v25
  %vm626 = vcmp.eq.s32.totalorder %v596, %v25
  %vm627 = vcmp.eq.s32.totalorder %v599, %v25
  %vm628 = vcmp.eq.s32.totalorder %v602, %v25
  %vm629 = vcmp.eq.s32.totalorder %v605, %v25
  %vm630 = vcmp.eq.s32.totalorder %v608, %v25
  %vm631 = vcmp.eq.s32.totalorder %v611, %v25
  %vm632 = vcmp.eq.s32.totalorder %v614, %v25
  %vm633 = vcmp.eq.s32.totalorder %v617, %v25
  %634 = vset.pattern.permute.xlu0 3
  %635 = vperm.xlu0 %634, %v42
  %v636 = vpop.permute.xlu0 %635
  %638 = vset.pattern.permute.xlu0 3
  %639 = vperm.xlu0 %638, %v43
  %v640 = vpop.permute.xlu0 %639
  %642 = vset.pattern.permute.xlu0 3
  %643 = vperm.xlu0 %642, %v44
  %v644 = vpop.permute.xlu0 %643
  %646 = vset.pattern.permute.xlu0 3
  %647 = vperm.xlu0 %646, %v45
  %v648 = vpop.permute.xlu0 %647
  %650 = vset.pattern.permute.xlu0 3
  %651 = vperm.xlu0 %650, %v46
  %v652 = vpop.permute.xlu0 %651
  %654 = vset.pattern.permute.xlu0 3
  %655 = vperm.xlu0 %654, %v47
  %v656 = vpop.permute.xlu0 %655
  %658 = vset.pattern.permute.xlu0 3
  %659 = vperm.xlu0 %658, %v48
  %v660 = vpop.permute.xlu0 %659
  %662 = vset.pattern.permute.xlu0 3
  %663 = vperm.xlu0 %662, %v49
  %v664 = vpop.permute.xlu0 %663
  %666 = vset.pattern.permute.xlu0 3
  %667 = vperm.xlu0 %666, %v50
  %v668 = vpop.permute.xlu0 %667
  %670 = vset.pattern.permute.xlu0 3
  %671 = vperm.xlu0 %670, %v51
  %v672 = vpop.permute.xlu0 %671
  %674 = vset.pattern.permute.xlu0 3
  %675 = vperm.xlu0 %674, %v52
  %v676 = vpop.permute.xlu0 %675
  %678 = vset.pattern.permute.xlu0 3
  %679 = vperm.xlu0 %678, %v53
  %v680 = vpop.permute.xlu0 %679
  %682 = vset.pattern.permute.xlu0 3
  %683 = vperm.xlu0 %682, %v54
  %v684 = vpop.permute.xlu0 %683
  %686 = vset.pattern.permute.xlu0 3
  %687 = vperm.xlu0 %686, %v55
  %v688 = vpop.permute.xlu0 %687
  %690 = vset.pattern.permute.xlu0 3
  %691 = vperm.xlu0 %690, %v56
  %v692 = vpop.permute.xlu0 %691
  %694 = vset.pattern.permute.xlu0 3
  %695 = vperm.xlu0 %694, %v57
  %v696 = vpop.permute.xlu0 %695
  %v698 = vsel %vm618, %v636, 0.0
  %v699 = vsel %vm619, %v640, 0.0
  %v700 = vsel %vm620, %v644, 0.0
  %v701 = vsel %vm621, %v648, 0.0
  %v702 = vsel %vm622, %v652, 0.0
  %v703 = vsel %vm623, %v656, 0.0
  %v704 = vsel %vm624, %v660, 0.0
  %v705 = vsel %vm625, %v664, 0.0
  %v706 = vsel %vm626, %v668, 0.0
  %v707 = vsel %vm627, %v672, 0.0
  %v708 = vsel %vm628, %v676, 0.0
  %v709 = vsel %vm629, %v680, 0.0
  %v710 = vsel %vm630, %v684, 0.0
  %v711 = vsel %vm631, %v688, 0.0
  %v712 = vsel %vm632, %v692, 0.0
  %v713 = vsel %vm633, %v696, 0.0
  %v714 = vadd.f32 %v554, %v698
  %v715 = vadd.f32 %v555, %v699
  %v716 = vadd.f32 %v556, %v700
  %v717 = vadd.f32 %v557, %v701
  %v718 = vadd.f32 %v558, %v702
  %v719 = vadd.f32 %v559, %v703
  %v720 = vadd.f32 %v560, %v704
  %v721 = vadd.f32 %v561, %v705
  %v722 = vadd.f32 %v562, %v706
  %v723 = vadd.f32 %v563, %v707
  %v724 = vadd.f32 %v564, %v708
  %v725 = vadd.f32 %v565, %v709
  %v726 = vadd.f32 %v566, %v710
  %v727 = vadd.f32 %v567, %v711
  %v728 = vadd.f32 %v568, %v712
  %v729 = vadd.f32 %v569, %v713
  %730 = vset.pattern.permute.xlu0 4
  %731 = vperm.xlu0 %730, %v26
  %v732 = vpop.permute.xlu0 %731
  %733 = vset.pattern.permute.xlu0 4
  %734 = vperm.xlu0 %733, %v27
  %v735 = vpop.permute.xlu0 %734
  %736 = vset.pattern.permute.xlu0 4
  %737 = vperm.xlu0 %736, %v28
  %v738 = vpop.permute.xlu0 %737
  %739 = vset.pattern.permute.xlu0 4
  %740 = vperm.xlu0 %739, %v29
  %v741 = vpop.permute.xlu0 %740
  %742 = vset.pattern.permute.xlu0 4
  %743 = vperm.xlu0 %742, %v30
  %v744 = vpop.permute.xlu0 %743
  %745 = vset.pattern.permute.xlu0 4
  %746 = vperm.xlu0 %745, %v31
  %v747 = vpop.permute.xlu0 %746
  %748 = vset.pattern.permute.xlu0 4
  %749 = vperm.xlu0 %748, %v32
  %v750 = vpop.permute.xlu0 %749
  %751 = vset.pattern.permute.xlu0 4
  %752 = vperm.xlu0 %751, %v33
  %v753 = vpop.permute.xlu0 %752
  %754 = vset.pattern.permute.xlu0 4
  %755 = vperm.xlu0 %754, %v34
  %v756 = vpop.permute.xlu0 %755
  %757 = vset.pattern.permute.xlu0 4
  %758 = vperm.xlu0 %757, %v35
  %v759 = vpop.permute.xlu0 %758
  %760 = vset.pattern.permute.xlu0 4
  %761 = vperm.xlu0 %760, %v36
  %v762 = vpop.permute.xlu0 %761
  %763 = vset.pattern.permute.xlu0 4
  %764 = vperm.xlu0 %763, %v37
  %v765 = vpop.permute.xlu0 %764
  %766 = vset.pattern.permute.xlu0 4
  %767 = vperm.xlu0 %766, %v38
  %v768 = vpop.permute.xlu0 %767
  %769 = vset.pattern.permute.xlu0 4
  %770 = vperm.xlu0 %769, %v39
  %v771 = vpop.permute.xlu0 %770
  %772 = vset.pattern.permute.xlu0 4
  %773 = vperm.xlu0 %772, %v40
  %v774 = vpop.permute.xlu0 %773
  %775 = vset.pattern.permute.xlu0 4
  %776 = vperm.xlu0 %775, %v41
  %v777 = vpop.permute.xlu0 %776
  %vm778 = vcmp.eq.s32.totalorder %v732, %v25
  %vm779 = vcmp.eq.s32.totalorder %v735, %v25
  %vm780 = vcmp.eq.s32.totalorder %v738, %v25
  %vm781 = vcmp.eq.s32.totalorder %v741, %v25
  %vm782 = vcmp.eq.s32.totalorder %v744, %v25
  %vm783 = vcmp.eq.s32.totalorder %v747, %v25
  %vm784 = vcmp.eq.s32.totalorder %v750, %v25
  %vm785 = vcmp.eq.s32.totalorder %v753, %v25
  %vm786 = vcmp.eq.s32.totalorder %v756, %v25
  %vm787 = vcmp.eq.s32.totalorder %v759, %v25
  %vm788 = vcmp.eq.s32.totalorder %v762, %v25
  %vm789 = vcmp.eq.s32.totalorder %v765, %v25
  %vm790 = vcmp.eq.s32.totalorder %v768, %v25
  %vm791 = vcmp.eq.s32.totalorder %v771, %v25
  %vm792 = vcmp.eq.s32.totalorder %v774, %v25
  %vm793 = vcmp.eq.s32.totalorder %v777, %v25
  %794 = vset.pattern.permute.xlu0 4
  %795 = vperm.xlu0 %794, %v42
  %v796 = vpop.permute.xlu0 %795
  %798 = vset.pattern.permute.xlu0 4
  %799 = vperm.xlu0 %798, %v43
  %v800 = vpop.permute.xlu0 %799
  %802 = vset.pattern.permute.xlu0 4
  %803 = vperm.xlu0 %802, %v44
  %v804 = vpop.permute.xlu0 %803
  %806 = vset.pattern.permute.xlu0 4
  %807 = vperm.xlu0 %806, %v45
  %v808 = vpop.permute.xlu0 %807
  %810 = vset.pattern.permute.xlu0 4
  %811 = vperm.xlu0 %810, %v46
  %v812 = vpop.permute.xlu0 %811
  %814 = vset.pattern.permute.xlu0 4
  %815 = vperm.xlu0 %814, %v47
  %v816 = vpop.permute.xlu0 %815
  %818 = vset.pattern.permute.xlu0 4
  %819 = vperm.xlu0 %818, %v48
  %v820 = vpop.permute.xlu0 %819
  %822 = vset.pattern.permute.xlu0 4
  %823 = vperm.xlu0 %822, %v49
  %v824 = vpop.permute.xlu0 %823
  %826 = vset.pattern.permute.xlu0 4
  %827 = vperm.xlu0 %826, %v50
  %v828 = vpop.permute.xlu0 %827
  %830 = vset.pattern.permute.xlu0 4
  %831 = vperm.xlu0 %830, %v51
  %v832 = vpop.permute.xlu0 %831
  %834 = vset.pattern.permute.xlu0 4
  %835 = vperm.xlu0 %834, %v52
  %v836 = vpop.permute.xlu0 %835
  %838 = vset.pattern.permute.xlu0 4
  %839 = vperm.xlu0 %838, %v53
  %v840 = vpop.permute.xlu0 %839
  %842 = vset.pattern.permute.xlu0 4
  %843 = vperm.xlu0 %842, %v54
  %v844 = vpop.permute.xlu0 %843
  %846 = vset.pattern.permute.xlu0 4
  %847 = vperm.xlu0 %846, %v55
  %v848 = vpop.permute.xlu0 %847
  %850 = vset.pattern.permute.xlu0 4
  %851 = vperm.xlu0 %850, %v56
  %v852 = vpop.permute.xlu0 %851
  %854 = vset.pattern.permute.xlu0 4
  %855 = vperm.xlu0 %854, %v57
  %v856 = vpop.permute.xlu0 %855
  %v858 = vsel %vm778, %v796, 0.0
  %v859 = vsel %vm779, %v800, 0.0
  %v860 = vsel %vm780, %v804, 0.0
  %v861 = vsel %vm781, %v808, 0.0
  %v862 = vsel %vm782, %v812, 0.0
  %v863 = vsel %vm783, %v816, 0.0
  %v864 = vsel %vm784, %v820, 0.0
  %v865 = vsel %vm785, %v824, 0.0
  %v866 = vsel %vm786, %v828, 0.0
  %v867 = vsel %vm787, %v832, 0.0
  %v868 = vsel %vm788, %v836, 0.0
  %v869 = vsel %vm789, %v840, 0.0
  %v870 = vsel %vm790, %v844, 0.0
  %v871 = vsel %vm791, %v848, 0.0
  %v872 = vsel %vm792, %v852, 0.0
  %v873 = vsel %vm793, %v856, 0.0
  %v874 = vadd.f32 %v714, %v858
  %v875 = vadd.f32 %v715, %v859
  %v876 = vadd.f32 %v716, %v860
  %v877 = vadd.f32 %v717, %v861
  %v878 = vadd.f32 %v718, %v862
  %v879 = vadd.f32 %v719, %v863
  %v880 = vadd.f32 %v720, %v864
  %v881 = vadd.f32 %v721, %v865
  %v882 = vadd.f32 %v722, %v866
  %v883 = vadd.f32 %v723, %v867
  %v884 = vadd.f32 %v724, %v868
  %v885 = vadd.f32 %v725, %v869
  %v886 = vadd.f32 %v726, %v870
  %v887 = vadd.f32 %v727, %v871
  %v888 = vadd.f32 %v728, %v872
  %v889 = vadd.f32 %v729, %v873
  %890 = vset.pattern.permute.xlu0 5
  %891 = vperm.xlu0 %890, %v26
  %v892 = vpop.permute.xlu0 %891
  %893 = vset.pattern.permute.xlu0 5
  %894 = vperm.xlu0 %893, %v27
  %v895 = vpop.permute.xlu0 %894
  %896 = vset.pattern.permute.xlu0 5
  %897 = vperm.xlu0 %896, %v28
  %v898 = vpop.permute.xlu0 %897
  %899 = vset.pattern.permute.xlu0 5
  %900 = vperm.xlu0 %899, %v29
  %v901 = vpop.permute.xlu0 %900
  %902 = vset.pattern.permute.xlu0 5
  %903 = vperm.xlu0 %902, %v30
  %v904 = vpop.permute.xlu0 %903
  %905 = vset.pattern.permute.xlu0 5
  %906 = vperm.xlu0 %905, %v31
  %v907 = vpop.permute.xlu0 %906
  %908 = vset.pattern.permute.xlu0 5
  %909 = vperm.xlu0 %908, %v32
  %v910 = vpop.permute.xlu0 %909
  %911 = vset.pattern.permute.xlu0 5
  %912 = vperm.xlu0 %911, %v33
  %v913 = vpop.permute.xlu0 %912
  %914 = vset.pattern.permute.xlu0 5
  %915 = vperm.xlu0 %914, %v34
  %v916 = vpop.permute.xlu0 %915
  %917 = vset.pattern.permute.xlu0 5
  %918 = vperm.xlu0 %917, %v35
  %v919 = vpop.permute.xlu0 %918
  %920 = vset.pattern.permute.xlu0 5
  %921 = vperm.xlu0 %920, %v36
  %v922 = vpop.permute.xlu0 %921
  %923 = vset.pattern.permute.xlu0 5
  %924 = vperm.xlu0 %923, %v37
  %v925 = vpop.permute.xlu0 %924
  %926 = vset.pattern.permute.xlu0 5
  %927 = vperm.xlu0 %926, %v38
  %v928 = vpop.permute.xlu0 %927
  %929 = vset.pattern.permute.xlu0 5
  %930 = vperm.xlu0 %929, %v39
  %v931 = vpop.permute.xlu0 %930
  %932 = vset.pattern.permute.xlu0 5
  %933 = vperm.xlu0 %932, %v40
  %v934 = vpop.permute.xlu0 %933
  %935 = vset.pattern.permute.xlu0 5
  %936 = vperm.xlu0 %935, %v41
  %v937 = vpop.permute.xlu0 %936
  %vm938 = vcmp.eq.s32.totalorder %v892, %v25
  %vm939 = vcmp.eq.s32.totalorder %v895, %v25
  %vm940 = vcmp.eq.s32.totalorder %v898, %v25
  %vm941 = vcmp.eq.s32.totalorder %v901, %v25
  %vm942 = vcmp.eq.s32.totalorder %v904, %v25
  %vm943 = vcmp.eq.s32.totalorder %v907, %v25
  %vm944 = vcmp.eq.s32.totalorder %v910, %v25
  %vm945 = vcmp.eq.s32.totalorder %v913, %v25
  %vm946 = vcmp.eq.s32.totalorder %v916, %v25
  %vm947 = vcmp.eq.s32.totalorder %v919, %v25
  %vm948 = vcmp.eq.s32.totalorder %v922, %v25
  %vm949 = vcmp.eq.s32.totalorder %v925, %v25
  %vm950 = vcmp.eq.s32.totalorder %v928, %v25
  %vm951 = vcmp.eq.s32.totalorder %v931, %v25
  %vm952 = vcmp.eq.s32.totalorder %v934, %v25
  %vm953 = vcmp.eq.s32.totalorder %v937, %v25
  %954 = vset.pattern.permute.xlu0 5
  %955 = vperm.xlu0 %954, %v42
  %v956 = vpop.permute.xlu0 %955
  %958 = vset.pattern.permute.xlu0 5
  %959 = vperm.xlu0 %958, %v43
  %v960 = vpop.permute.xlu0 %959
  %962 = vset.pattern.permute.xlu0 5
  %963 = vperm.xlu0 %962, %v44
  %v964 = vpop.permute.xlu0 %963
  %966 = vset.pattern.permute.xlu0 5
  %967 = vperm.xlu0 %966, %v45
  %v968 = vpop.permute.xlu0 %967
  %970 = vset.pattern.permute.xlu0 5
  %971 = vperm.xlu0 %970, %v46
  %v972 = vpop.permute.xlu0 %971
  %974 = vset.pattern.permute.xlu0 5
  %975 = vperm.xlu0 %974, %v47
  %v976 = vpop.permute.xlu0 %975
  %978 = vset.pattern.permute.xlu0 5
  %979 = vperm.xlu0 %978, %v48
  %v980 = vpop.permute.xlu0 %979
  %982 = vset.pattern.permute.xlu0 5
  %983 = vperm.xlu0 %982, %v49
  %v984 = vpop.permute.xlu0 %983
  %986 = vset.pattern.permute.xlu0 5
  %987 = vperm.xlu0 %986, %v50
  %v988 = vpop.permute.xlu0 %987
  %990 = vset.pattern.permute.xlu0 5
  %991 = vperm.xlu0 %990, %v51
  %v992 = vpop.permute.xlu0 %991
  %994 = vset.pattern.permute.xlu0 5
  %995 = vperm.xlu0 %994, %v52
  %v996 = vpop.permute.xlu0 %995
  %998 = vset.pattern.permute.xlu0 5
  %999 = vperm.xlu0 %998, %v53
  %v1000 = vpop.permute.xlu0 %999
  %1002 = vset.pattern.permute.xlu0 5
  %1003 = vperm.xlu0 %1002, %v54
  %v1004 = vpop.permute.xlu0 %1003
  %1006 = vset.pattern.permute.xlu0 5
  %1007 = vperm.xlu0 %1006, %v55
  %v1008 = vpop.permute.xlu0 %1007
  %1010 = vset.pattern.permute.xlu0 5
  %1011 = vperm.xlu0 %1010, %v56
  %v1012 = vpop.permute.xlu0 %1011
  %1014 = vset.pattern.permute.xlu0 5
  %1015 = vperm.xlu0 %1014, %v57
  %v1016 = vpop.permute.xlu0 %1015
  %v1018 = vsel %vm938, %v956, 0.0
  %v1019 = vsel %vm939, %v960, 0.0
  %v1020 = vsel %vm940, %v964, 0.0
  %v1021 = vsel %vm941, %v968, 0.0
  %v1022 = vsel %vm942, %v972, 0.0
  %v1023 = vsel %vm943, %v976, 0.0
  %v1024 = vsel %vm944, %v980, 0.0
  %v1025 = vsel %vm945, %v984, 0.0
  %v1026 = vsel %vm946, %v988, 0.0
  %v1027 = vsel %vm947, %v992, 0.0
  %v1028 = vsel %vm948, %v996, 0.0
  %v1029 = vsel %vm949, %v1000, 0.0
  %v1030 = vsel %vm950, %v1004, 0.0
  %v1031 = vsel %vm951, %v1008, 0.0
  %v1032 = vsel %vm952, %v1012, 0.0
  %v1033 = vsel %vm953, %v1016, 0.0
  %v1034 = vadd.f32 %v874, %v1018
  %v1035 = vadd.f32 %v875, %v1019
  %v1036 = vadd.f32 %v876, %v1020
  %v1037 = vadd.f32 %v877, %v1021
  %v1038 = vadd.f32 %v878, %v1022
  %v1039 = vadd.f32 %v879, %v1023
  %v1040 = vadd.f32 %v880, %v1024
  %v1041 = vadd.f32 %v881, %v1025
  %v1042 = vadd.f32 %v882, %v1026
  %v1043 = vadd.f32 %v883, %v1027
  %v1044 = vadd.f32 %v884, %v1028
  %v1045 = vadd.f32 %v885, %v1029
  %v1046 = vadd.f32 %v886, %v1030
  %v1047 = vadd.f32 %v887, %v1031
  %v1048 = vadd.f32 %v888, %v1032
  %v1049 = vadd.f32 %v889, %v1033
  %1050 = vset.pattern.permute.xlu0 6
  %1051 = vperm.xlu0 %1050, %v26
  %v1052 = vpop.permute.xlu0 %1051
  %1053 = vset.pattern.permute.xlu0 6
  %1054 = vperm.xlu0 %1053, %v27
  %v1055 = vpop.permute.xlu0 %1054
  %1056 = vset.pattern.permute.xlu0 6
  %1057 = vperm.xlu0 %1056, %v28
  %v1058 = vpop.permute.xlu0 %1057
  %1059 = vset.pattern.permute.xlu0 6
  %1060 = vperm.xlu0 %1059, %v29
  %v1061 = vpop.permute.xlu0 %1060
  %1062 = vset.pattern.permute.xlu0 6
  %1063 = vperm.xlu0 %1062, %v30
  %v1064 = vpop.permute.xlu0 %1063
  %1065 = vset.pattern.permute.xlu0 6
  %1066 = vperm.xlu0 %1065, %v31
  %v1067 = vpop.permute.xlu0 %1066
  %1068 = vset.pattern.permute.xlu0 6
  %1069 = vperm.xlu0 %1068, %v32
  %v1070 = vpop.permute.xlu0 %1069
  %1071 = vset.pattern.permute.xlu0 6
  %1072 = vperm.xlu0 %1071, %v33
  %v1073 = vpop.permute.xlu0 %1072
  %1074 = vset.pattern.permute.xlu0 6
  %1075 = vperm.xlu0 %1074, %v34
  %v1076 = vpop.permute.xlu0 %1075
  %1077 = vset.pattern.permute.xlu0 6
  %1078 = vperm.xlu0 %1077, %v35
  %v1079 = vpop.permute.xlu0 %1078
  %1080 = vset.pattern.permute.xlu0 6
  %1081 = vperm.xlu0 %1080, %v36
  %v1082 = vpop.permute.xlu0 %1081
  %1083 = vset.pattern.permute.xlu0 6
  %1084 = vperm.xlu0 %1083, %v37
  %v1085 = vpop.permute.xlu0 %1084
  %1086 = vset.pattern.permute.xlu0 6
  %1087 = vperm.xlu0 %1086, %v38
  %v1088 = vpop.permute.xlu0 %1087
  %1089 = vset.pattern.permute.xlu0 6
  %1090 = vperm.xlu0 %1089, %v39
  %v1091 = vpop.permute.xlu0 %1090
  %1092 = vset.pattern.permute.xlu0 6
  %1093 = vperm.xlu0 %1092, %v40
  %v1094 = vpop.permute.xlu0 %1093
  %1095 = vset.pattern.permute.xlu0 6
  %1096 = vperm.xlu0 %1095, %v41
  %v1097 = vpop.permute.xlu0 %1096
  %vm1098 = vcmp.eq.s32.totalorder %v1052, %v25
  %vm1099 = vcmp.eq.s32.totalorder %v1055, %v25
  %vm1100 = vcmp.eq.s32.totalorder %v1058, %v25
  %vm1101 = vcmp.eq.s32.totalorder %v1061, %v25
  %vm1102 = vcmp.eq.s32.totalorder %v1064, %v25
  %vm1103 = vcmp.eq.s32.totalorder %v1067, %v25
  %vm1104 = vcmp.eq.s32.totalorder %v1070, %v25
  %vm1105 = vcmp.eq.s32.totalorder %v1073, %v25
  %vm1106 = vcmp.eq.s32.totalorder %v1076, %v25
  %vm1107 = vcmp.eq.s32.totalorder %v1079, %v25
  %vm1108 = vcmp.eq.s32.totalorder %v1082, %v25
  %vm1109 = vcmp.eq.s32.totalorder %v1085, %v25
  %vm1110 = vcmp.eq.s32.totalorder %v1088, %v25
  %vm1111 = vcmp.eq.s32.totalorder %v1091, %v25
  %vm1112 = vcmp.eq.s32.totalorder %v1094, %v25
  %vm1113 = vcmp.eq.s32.totalorder %v1097, %v25
  %1114 = vset.pattern.permute.xlu0 6
  %1115 = vperm.xlu0 %1114, %v42
  %v1116 = vpop.permute.xlu0 %1115
  %1118 = vset.pattern.permute.xlu0 6
  %1119 = vperm.xlu0 %1118, %v43
  %v1120 = vpop.permute.xlu0 %1119
  %1122 = vset.pattern.permute.xlu0 6
  %1123 = vperm.xlu0 %1122, %v44
  %v1124 = vpop.permute.xlu0 %1123
  %1126 = vset.pattern.permute.xlu0 6
  %1127 = vperm.xlu0 %1126, %v45
  %v1128 = vpop.permute.xlu0 %1127
  %1130 = vset.pattern.permute.xlu0 6
  %1131 = vperm.xlu0 %1130, %v46
  %v1132 = vpop.permute.xlu0 %1131
  %1134 = vset.pattern.permute.xlu0 6
  %1135 = vperm.xlu0 %1134, %v47
  %v1136 = vpop.permute.xlu0 %1135
  %1138 = vset.pattern.permute.xlu0 6
  %1139 = vperm.xlu0 %1138, %v48
  %v1140 = vpop.permute.xlu0 %1139
  %1142 = vset.pattern.permute.xlu0 6
  %1143 = vperm.xlu0 %1142, %v49
  %v1144 = vpop.permute.xlu0 %1143
  %1146 = vset.pattern.permute.xlu0 6
  %1147 = vperm.xlu0 %1146, %v50
  %v1148 = vpop.permute.xlu0 %1147
  %1150 = vset.pattern.permute.xlu0 6
  %1151 = vperm.xlu0 %1150, %v51
  %v1152 = vpop.permute.xlu0 %1151
  %1154 = vset.pattern.permute.xlu0 6
  %1155 = vperm.xlu0 %1154, %v52
  %v1156 = vpop.permute.xlu0 %1155
  %1158 = vset.pattern.permute.xlu0 6
  %1159 = vperm.xlu0 %1158, %v53
  %v1160 = vpop.permute.xlu0 %1159
  %1162 = vset.pattern.permute.xlu0 6
  %1163 = vperm.xlu0 %1162, %v54
  %v1164 = vpop.permute.xlu0 %1163
  %1166 = vset.pattern.permute.xlu0 6
  %1167 = vperm.xlu0 %1166, %v55
  %v1168 = vpop.permute.xlu0 %1167
  %1170 = vset.pattern.permute.xlu0 6
  %1171 = vperm.xlu0 %1170, %v56
  %v1172 = vpop.permute.xlu0 %1171
  %1174 = vset.pattern.permute.xlu0 6
  %1175 = vperm.xlu0 %1174, %v57
  %v1176 = vpop.permute.xlu0 %1175
  %v1178 = vsel %vm1098, %v1116, 0.0
  %v1179 = vsel %vm1099, %v1120, 0.0
  %v1180 = vsel %vm1100, %v1124, 0.0
  %v1181 = vsel %vm1101, %v1128, 0.0
  %v1182 = vsel %vm1102, %v1132, 0.0
  %v1183 = vsel %vm1103, %v1136, 0.0
  %v1184 = vsel %vm1104, %v1140, 0.0
  %v1185 = vsel %vm1105, %v1144, 0.0
  %v1186 = vsel %vm1106, %v1148, 0.0
  %v1187 = vsel %vm1107, %v1152, 0.0
  %v1188 = vsel %vm1108, %v1156, 0.0
  %v1189 = vsel %vm1109, %v1160, 0.0
  %v1190 = vsel %vm1110, %v1164, 0.0
  %v1191 = vsel %vm1111, %v1168, 0.0
  %v1192 = vsel %vm1112, %v1172, 0.0
  %v1193 = vsel %vm1113, %v1176, 0.0
  %v1194 = vadd.f32 %v1034, %v1178
  %v1195 = vadd.f32 %v1035, %v1179
  %v1196 = vadd.f32 %v1036, %v1180
  %v1197 = vadd.f32 %v1037, %v1181
  %v1198 = vadd.f32 %v1038, %v1182
  %v1199 = vadd.f32 %v1039, %v1183
  %v1200 = vadd.f32 %v1040, %v1184
  %v1201 = vadd.f32 %v1041, %v1185
  %v1202 = vadd.f32 %v1042, %v1186
  %v1203 = vadd.f32 %v1043, %v1187
  %v1204 = vadd.f32 %v1044, %v1188
  %v1205 = vadd.f32 %v1045, %v1189
  %v1206 = vadd.f32 %v1046, %v1190
  %v1207 = vadd.f32 %v1047, %v1191
  %v1208 = vadd.f32 %v1048, %v1192
  %v1209 = vadd.f32 %v1049, %v1193
  %1210 = vset.pattern.permute.xlu0 7
  %1211 = vperm.xlu0 %1210, %v26
  %v1212 = vpop.permute.xlu0 %1211
  %1213 = vset.pattern.permute.xlu0 7
  %1214 = vperm.xlu0 %1213, %v27
  %v1215 = vpop.permute.xlu0 %1214
  %1216 = vset.pattern.permute.xlu0 7
  %1217 = vperm.xlu0 %1216, %v28
  %v1218 = vpop.permute.xlu0 %1217
  %1219 = vset.pattern.permute.xlu0 7
  %1220 = vperm.xlu0 %1219, %v29
  %v1221 = vpop.permute.xlu0 %1220
  %1222 = vset.pattern.permute.xlu0 7
  %1223 = vperm.xlu0 %1222, %v30
  %v1224 = vpop.permute.xlu0 %1223
  %1225 = vset.pattern.permute.xlu0 7
  %1226 = vperm.xlu0 %1225, %v31
  %v1227 = vpop.permute.xlu0 %1226
  %1228 = vset.pattern.permute.xlu0 7
  %1229 = vperm.xlu0 %1228, %v32
  %v1230 = vpop.permute.xlu0 %1229
  %1231 = vset.pattern.permute.xlu0 7
  %1232 = vperm.xlu0 %1231, %v33
  %v1233 = vpop.permute.xlu0 %1232
  %1234 = vset.pattern.permute.xlu0 7
  %1235 = vperm.xlu0 %1234, %v34
  %v1236 = vpop.permute.xlu0 %1235
  %1237 = vset.pattern.permute.xlu0 7
  %1238 = vperm.xlu0 %1237, %v35
  %v1239 = vpop.permute.xlu0 %1238
  %1240 = vset.pattern.permute.xlu0 7
  %1241 = vperm.xlu0 %1240, %v36
  %v1242 = vpop.permute.xlu0 %1241
  %1243 = vset.pattern.permute.xlu0 7
  %1244 = vperm.xlu0 %1243, %v37
  %v1245 = vpop.permute.xlu0 %1244
  %1246 = vset.pattern.permute.xlu0 7
  %1247 = vperm.xlu0 %1246, %v38
  %v1248 = vpop.permute.xlu0 %1247
  %1249 = vset.pattern.permute.xlu0 7
  %1250 = vperm.xlu0 %1249, %v39
  %v1251 = vpop.permute.xlu0 %1250
  %1252 = vset.pattern.permute.xlu0 7
  %1253 = vperm.xlu0 %1252, %v40
  %v1254 = vpop.permute.xlu0 %1253
  %1255 = vset.pattern.permute.xlu0 7
  %1256 = vperm.xlu0 %1255, %v41
  %v1257 = vpop.permute.xlu0 %1256
  %vm1258 = vcmp.eq.s32.totalorder %v1212, %v25
  %vm1259 = vcmp.eq.s32.totalorder %v1215, %v25
  %vm1260 = vcmp.eq.s32.totalorder %v1218, %v25
  %vm1261 = vcmp.eq.s32.totalorder %v1221, %v25
  %vm1262 = vcmp.eq.s32.totalorder %v1224, %v25
  %vm1263 = vcmp.eq.s32.totalorder %v1227, %v25
  %vm1264 = vcmp.eq.s32.totalorder %v1230, %v25
  %vm1265 = vcmp.eq.s32.totalorder %v1233, %v25
  %vm1266 = vcmp.eq.s32.totalorder %v1236, %v25
  %vm1267 = vcmp.eq.s32.totalorder %v1239, %v25
  %vm1268 = vcmp.eq.s32.totalorder %v1242, %v25
  %vm1269 = vcmp.eq.s32.totalorder %v1245, %v25
  %vm1270 = vcmp.eq.s32.totalorder %v1248, %v25
  %vm1271 = vcmp.eq.s32.totalorder %v1251, %v25
  %vm1272 = vcmp.eq.s32.totalorder %v1254, %v25
  %vm1273 = vcmp.eq.s32.totalorder %v1257, %v25
  %1274 = vset.pattern.permute.xlu0 7
  %1275 = vperm.xlu0 %1274, %v42
  %v1276 = vpop.permute.xlu0 %1275
  %1278 = vset.pattern.permute.xlu0 7
  %1279 = vperm.xlu0 %1278, %v43
  %v1280 = vpop.permute.xlu0 %1279
  %1282 = vset.pattern.permute.xlu0 7
  %1283 = vperm.xlu0 %1282, %v44
  %v1284 = vpop.permute.xlu0 %1283
  %1286 = vset.pattern.permute.xlu0 7
  %1287 = vperm.xlu0 %1286, %v45
  %v1288 = vpop.permute.xlu0 %1287
  %1290 = vset.pattern.permute.xlu0 7
  %1291 = vperm.xlu0 %1290, %v46
  %v1292 = vpop.permute.xlu0 %1291
  %1294 = vset.pattern.permute.xlu0 7
  %1295 = vperm.xlu0 %1294, %v47
  %v1296 = vpop.permute.xlu0 %1295
  %1298 = vset.pattern.permute.xlu0 7
  %1299 = vperm.xlu0 %1298, %v48
  %v1300 = vpop.permute.xlu0 %1299
  %1302 = vset.pattern.permute.xlu0 7
  %1303 = vperm.xlu0 %1302, %v49
  %v1304 = vpop.permute.xlu0 %1303
  %1306 = vset.pattern.permute.xlu0 7
  %1307 = vperm.xlu0 %1306, %v50
  %v1308 = vpop.permute.xlu0 %1307
  %1310 = vset.pattern.permute.xlu0 7
  %1311 = vperm.xlu0 %1310, %v51
  %v1312 = vpop.permute.xlu0 %1311
  %1314 = vset.pattern.permute.xlu0 7
  %1315 = vperm.xlu0 %1314, %v52
  %v1316 = vpop.permute.xlu0 %1315
  %1318 = vset.pattern.permute.xlu0 7
  %1319 = vperm.xlu0 %1318, %v53
  %v1320 = vpop.permute.xlu0 %1319
  %1322 = vset.pattern.permute.xlu0 7
  %1323 = vperm.xlu0 %1322, %v54
  %v1324 = vpop.permute.xlu0 %1323
  %1326 = vset.pattern.permute.xlu0 7
  %1327 = vperm.xlu0 %1326, %v55
  %v1328 = vpop.permute.xlu0 %1327
  %1330 = vset.pattern.permute.xlu0 7
  %1331 = vperm.xlu0 %1330, %v56
  %v1332 = vpop.permute.xlu0 %1331
  %1334 = vset.pattern.permute.xlu0 7
  %1335 = vperm.xlu0 %1334, %v57
  %v1336 = vpop.permute.xlu0 %1335
  %v1338 = vsel %vm1258, %v1276, 0.0
  %v1339 = vsel %vm1259, %v1280, 0.0
  %v1340 = vsel %vm1260, %v1284, 0.0
  %v1341 = vsel %vm1261, %v1288, 0.0
  %v1342 = vsel %vm1262, %v1292, 0.0
  %v1343 = vsel %vm1263, %v1296, 0.0
  %v1344 = vsel %vm1264, %v1300, 0.0
  %v1345 = vsel %vm1265, %v1304, 0.0
  %v1346 = vsel %vm1266, %v1308, 0.0
  %v1347 = vsel %vm1267, %v1312, 0.0
  %v1348 = vsel %vm1268, %v1316, 0.0
  %v1349 = vsel %vm1269, %v1320, 0.0
  %v1350 = vsel %vm1270, %v1324, 0.0
  %v1351 = vsel %vm1271, %v1328, 0.0
  %v1352 = vsel %vm1272, %v1332, 0.0
  %v1353 = vsel %vm1273, %v1336, 0.0
  %v1354 = vadd.f32 %v1194, %v1338
  %v1355 = vadd.f32 %v1195, %v1339
  %v1356 = vadd.f32 %v1196, %v1340
  %v1357 = vadd.f32 %v1197, %v1341
  %v1358 = vadd.f32 %v1198, %v1342
  %v1359 = vadd.f32 %v1199, %v1343
  %v1360 = vadd.f32 %v1200, %v1344
  %v1361 = vadd.f32 %v1201, %v1345
  %v1362 = vadd.f32 %v1202, %v1346
  %v1363 = vadd.f32 %v1203, %v1347
  %v1364 = vadd.f32 %v1204, %v1348
  %v1365 = vadd.f32 %v1205, %v1349
  %v1366 = vadd.f32 %v1206, %v1350
  %v1367 = vadd.f32 %v1207, %v1351
  %v1368 = vadd.f32 %v1208, %v1352
  %v1369 = vadd.f32 %v1209, %v1353
  %v1370 = vpack.c.bf16 %v1355, %v1354
  %v1371 = vpack.c.bf16 %v1357, %v1356
  %v1372 = vpack.c.bf16 %v1359, %v1358
  %v1373 = vpack.c.bf16 %v1361, %v1360
  %v1374 = vpack.c.bf16 %v1363, %v1362
  %v1375 = vpack.c.bf16 %v1365, %v1364
  %v1376 = vpack.c.bf16 %v1367, %v1366
  %v1377 = vpack.c.bf16 %v1369, %v1368
  %v1378 = vld [vmem:[%s3] sm:$0xf]
  %v1379 = vld [vmem:[%s3 + $0x4] sm:$0xf]
  %v1380 = vld [vmem:[%s3 + $0x8] sm:$0xf]
  %v1381 = vld [vmem:[%s3 + $0xc] sm:$0xf]
  %v1382 = vld [vmem:[%s3 + $0x10] sm:$0xf]
  %v1383 = vld [vmem:[%s3 + $0x14] sm:$0xf]
  %v1384 = vld [vmem:[%s3 + $0x18] sm:$0xf]
  %v1385 = vld [vmem:[%s3 + $0x1c] sm:$0xf]
  %v1386 = vld [vmem:[%s3 + $0x20] sm:$0xf]
  %v1387 = vld [vmem:[%s3 + $0x24] sm:$0xf]
  %v1388 = vld [vmem:[%s3 + $0x28] sm:$0xf]
  %v1389 = vld [vmem:[%s3 + $0x2c] sm:$0xf]
  %v1390 = vld [vmem:[%s3 + $0x30] sm:$0xf]
  %v1391 = vld [vmem:[%s3 + $0x34] sm:$0xf]
  %v1392 = vld [vmem:[%s3 + $0x38] sm:$0xf]
  %v1393 = vld [vmem:[%s3 + $0x3c] sm:$0xf]
  %v1394 = vld [vmem:[%s4] sm:$0xf]
  %v1395 = vld [vmem:[%s4 + $0x4] sm:$0xf]
  %v1396 = vld [vmem:[%s4 + $0x8] sm:$0xf]
  %v1397 = vld [vmem:[%s4 + $0xc] sm:$0xf]
  %v1398 = vld [vmem:[%s4 + $0x10] sm:$0xf]
  %v1399 = vld [vmem:[%s4 + $0x14] sm:$0xf]
  %v1400 = vld [vmem:[%s4 + $0x18] sm:$0xf]
  %v1401 = vld [vmem:[%s4 + $0x1c] sm:$0xf]
  %v1402 = vld [vmem:[%s4 + $0x20] sm:$0xf]
  %v1403 = vld [vmem:[%s4 + $0x24] sm:$0xf]
  %v1404 = vld [vmem:[%s4 + $0x28] sm:$0xf]
  %v1405 = vld [vmem:[%s4 + $0x2c] sm:$0xf]
  %v1406 = vld [vmem:[%s4 + $0x30] sm:$0xf]
  %v1407 = vld [vmem:[%s4 + $0x34] sm:$0xf]
  %v1408 = vld [vmem:[%s4 + $0x38] sm:$0xf]
  %v1409 = vld [vmem:[%s4 + $0x3c] sm:$0xf]
  %v1426 = vunpack.c.l.b16 %v1394
  %v1427 = vunpack.c.l.b16 %v1395
  %v1428 = vunpack.c.l.b16 %v1396
  %v1429 = vunpack.c.l.b16 %v1397
  %v1430 = vunpack.c.l.b16 %v1398
  %v1431 = vunpack.c.l.b16 %v1399
  %v1432 = vunpack.c.l.b16 %v1400
  %v1433 = vunpack.c.l.b16 %v1401
  %v1434 = vunpack.c.l.b16 %v1402
  %v1435 = vunpack.c.l.b16 %v1403
  %v1436 = vunpack.c.l.b16 %v1404
  %v1437 = vunpack.c.l.b16 %v1405
  %v1438 = vunpack.c.l.b16 %v1406
  %v1439 = vunpack.c.l.b16 %v1407
  %v1440 = vunpack.c.l.b16 %v1408
  %v1441 = vunpack.c.l.b16 %v1409
  %v1442 = vpack.c.b16 %v1427, %v1426
  %v1443 = vpack.c.b16 %v1429, %v1428
  %v1444 = vpack.c.b16 %v1431, %v1430
  %v1445 = vpack.c.b16 %v1433, %v1432
  %v1446 = vpack.c.b16 %v1435, %v1434
  %v1447 = vpack.c.b16 %v1437, %v1436
  %v1448 = vpack.c.b16 %v1439, %v1438
  %v1449 = vpack.c.b16 %v1441, %v1440
  %1458 = vmatprep.subr.bf16.mxu0 0
  %1459 = vmatpush1.bf16.msra.mxu0 %v1442
  %1460 = vmatprep.subr.bf16.mxu0 0
  %1461 = vmatpush1.bf16.msra.mxu0 %v1443
  %1462 = vmatprep.subr.bf16.mxu0 0
  %1463 = vmatpush1.bf16.msra.mxu0 %v1444
  %1464 = vmatprep.subr.bf16.mxu0 0
  %1465 = vmatpush1.bf16.msra.mxu0 %v1445
  %1466 = vmatprep.subr.bf16.mxu0 0
  %1467 = vmatpush1.bf16.msra.mxu0 %v1446
  %1468 = vmatprep.subr.bf16.mxu0 0
  %1469 = vmatpush1.bf16.msra.mxu0 %v1447
  %1470 = vmatprep.subr.bf16.mxu0 0
  %1471 = vmatpush1.bf16.msra.mxu0 %v1448
  %1472 = vmatprep.subr.bf16.mxu0 0
  %1473 = vmatpush1.bf16.msra.mxu0 %v1449
  %1474 = vmatprep.subr.bf16.mxu0 0
  %1475 = vmatpush1.bf16.msra.mxu0 0
  %1476 = vmatprep.subr.bf16.mxu0 0
  %1477 = vmatpush1.bf16.msra.mxu0 0
  %1478 = vmatprep.subr.bf16.mxu0 0
  %1479 = vmatpush1.bf16.msra.mxu0 0
  %1480 = vmatprep.subr.bf16.mxu0 0
  %1481 = vmatpush1.bf16.msra.mxu0 0
  %1482 = vmatprep.subr.bf16.mxu0 0
  %1483 = vmatpush1.bf16.msra.mxu0 0
  %1484 = vmatprep.subr.bf16.mxu0 0
  %1485 = vmatpush1.bf16.msra.mxu0 0
  %1486 = vmatprep.subr.bf16.mxu0 0
  %1487 = vmatpush1.bf16.msra.mxu0 0
  %1488 = vmatprep.subr.bf16.mxu0 0
  %1489 = vmatpush1.bf16.msra.mxu0 0
  %1490 = vmatprep.mubr.bf16.mxu0 0
  %1491 = vmatmul.mubr.bf16.gmra.mrb[0].mxu0 %v1370
  %v1492 = vpop.f32.mrb[0].mxu0
  %v1493 = vadd.f32 0.0, %v1492
  %v1494 = vpop.f32.mrb[0].mxu0
  %v1495 = vpop.f32.mrb[0].mxu0
  %v1496 = vadd.f32 0.0, %v1495
  %v1497 = vpop.f32.mrb[0].mxu0
  %1498 = vmatprep.mubr.bf16.mxu0 0
  %1499 = vmatmul.mubr.bf16.gmra.mrb[0].mxu0 %v1371
  %v1500 = vpop.f32.mrb[0].mxu0
  %v1501 = vadd.f32 0.0, %v1500
  %v1502 = vpop.f32.mrb[0].mxu0
  %v1503 = vpop.f32.mrb[0].mxu0
  %v1504 = vadd.f32 0.0, %v1503
  %v1505 = vpop.f32.mrb[0].mxu0
  %1506 = vmatprep.mubr.bf16.mxu0 0
  %1507 = vmatmul.mubr.bf16.gmra.mrb[0].mxu0 %v1372
  %v1508 = vpop.f32.mrb[0].mxu0
  %v1509 = vadd.f32 0.0, %v1508
  %v1510 = vpop.f32.mrb[0].mxu0
  %v1511 = vpop.f32.mrb[0].mxu0
  %v1512 = vadd.f32 0.0, %v1511
  %v1513 = vpop.f32.mrb[0].mxu0
  %1514 = vmatprep.mubr.bf16.mxu0 0
  %1515 = vmatmul.mubr.bf16.gmra.mrb[0].mxu0 %v1373
  %v1516 = vpop.f32.mrb[0].mxu0
  %v1517 = vadd.f32 0.0, %v1516
  %v1518 = vpop.f32.mrb[0].mxu0
  %v1519 = vpop.f32.mrb[0].mxu0
  %v1520 = vadd.f32 0.0, %v1519
  %v1521 = vpop.f32.mrb[0].mxu0
  %1522 = vmatprep.mubr.bf16.mxu0 0
  %1523 = vmatmul.mubr.bf16.gmra.mrb[0].mxu0 %v1374
  %v1524 = vpop.f32.mrb[0].mxu0
  %v1525 = vadd.f32 0.0, %v1524
  %v1526 = vpop.f32.mrb[0].mxu0
  %v1527 = vpop.f32.mrb[0].mxu0
  %v1528 = vadd.f32 0.0, %v1527
  %v1529 = vpop.f32.mrb[0].mxu0
  %1530 = vmatprep.mubr.bf16.mxu0 0
  %1531 = vmatmul.mubr.bf16.gmra.mrb[0].mxu0 %v1375
  %v1532 = vpop.f32.mrb[0].mxu0
  %v1533 = vadd.f32 0.0, %v1532
  %v1534 = vpop.f32.mrb[0].mxu0
  %v1535 = vpop.f32.mrb[0].mxu0
  %v1536 = vadd.f32 0.0, %v1535
  %v1537 = vpop.f32.mrb[0].mxu0
  %1538 = vmatprep.mubr.bf16.mxu0 0
  %1539 = vmatmul.mubr.bf16.gmra.mrb[0].mxu0 %v1376
  %v1540 = vpop.f32.mrb[0].mxu0
  %v1541 = vadd.f32 0.0, %v1540
  %v1542 = vpop.f32.mrb[0].mxu0
  %v1543 = vpop.f32.mrb[0].mxu0
  %v1544 = vadd.f32 0.0, %v1543
  %v1545 = vpop.f32.mrb[0].mxu0
  %1546 = vmatprep.mubr.bf16.mxu0 0
  %1547 = vmatmul.mubr.bf16.gmra.mrb[0].mxu0 %v1377
  %v1548 = vpop.f32.mrb[0].mxu0
  %v1549 = vadd.f32 0.0, %v1548
  %v1550 = vpop.f32.mrb[0].mxu0
  %v1551 = vpop.f32.mrb[0].mxu0
  %v1552 = vadd.f32 0.0, %v1551
  %v1553 = vpop.f32.mrb[0].mxu0
  %1554 = vdwg.mxu0
  %v1571 = vunpack.c.l.b16 %v1378
  %v1572 = vunpack.c.l.b16 %v1379
  %v1573 = vunpack.c.l.b16 %v1380
  %v1574 = vunpack.c.l.b16 %v1381
  %v1575 = vunpack.c.l.b16 %v1382
  %v1576 = vunpack.c.l.b16 %v1383
  %v1577 = vunpack.c.l.b16 %v1384
  %v1578 = vunpack.c.l.b16 %v1385
  %v1579 = vunpack.c.l.b16 %v1386
  %v1580 = vunpack.c.l.b16 %v1387
  %v1581 = vunpack.c.l.b16 %v1388
  %v1582 = vunpack.c.l.b16 %v1389
  %v1583 = vunpack.c.l.b16 %v1390
  %v1584 = vunpack.c.l.b16 %v1391
  %v1585 = vunpack.c.l.b16 %v1392
  %v1586 = vunpack.c.l.b16 %v1393
  %v1587 = vpack.c.b16 %v1572, %v1571
  %v1588 = vpack.c.b16 %v1574, %v1573
  %v1589 = vpack.c.b16 %v1576, %v1575
  %v1590 = vpack.c.b16 %v1578, %v1577
  %v1591 = vpack.c.b16 %v1580, %v1579
  %v1592 = vpack.c.b16 %v1582, %v1581
  %v1593 = vpack.c.b16 %v1584, %v1583
  %v1594 = vpack.c.b16 %v1586, %v1585
  %1603 = vmatprep.subr.bf16.mxu0 0
  %1604 = vmatpush1.bf16.msra.mxu0 %v1587
  %1605 = vmatprep.subr.bf16.mxu0 0
  %1606 = vmatpush1.bf16.msra.mxu0 %v1588
  %1607 = vmatprep.subr.bf16.mxu0 0
  %1608 = vmatpush1.bf16.msra.mxu0 %v1589
  %1609 = vmatprep.subr.bf16.mxu0 0
  %1610 = vmatpush1.bf16.msra.mxu0 %v1590
  %1611 = vmatprep.subr.bf16.mxu0 0
  %1612 = vmatpush1.bf16.msra.mxu0 %v1591
  %1613 = vmatprep.subr.bf16.mxu0 0
  %1614 = vmatpush1.bf16.msra.mxu0 %v1592
  %1615 = vmatprep.subr.bf16.mxu0 0
  %1616 = vmatpush1.bf16.msra.mxu0 %v1593
  %1617 = vmatprep.subr.bf16.mxu0 0
  %1618 = vmatpush1.bf16.msra.mxu0 %v1594
  %1619 = vmatprep.subr.bf16.mxu0 0
  %1620 = vmatpush1.bf16.msra.mxu0 0
  %1621 = vmatprep.subr.bf16.mxu0 0
  %1622 = vmatpush1.bf16.msra.mxu0 0
  %1623 = vmatprep.subr.bf16.mxu0 0
  %1624 = vmatpush1.bf16.msra.mxu0 0
  %1625 = vmatprep.subr.bf16.mxu0 0
  %1626 = vmatpush1.bf16.msra.mxu0 0
  %1627 = vmatprep.subr.bf16.mxu0 0
  %1628 = vmatpush1.bf16.msra.mxu0 0
  %1629 = vmatprep.subr.bf16.mxu0 0
  %1630 = vmatpush1.bf16.msra.mxu0 0
  %1631 = vmatprep.subr.bf16.mxu0 0
  %1632 = vmatpush1.bf16.msra.mxu0 0
  %1633 = vmatprep.subr.bf16.mxu0 0
  %1634 = vmatpush1.bf16.msra.mxu0 0
  %1635 = vmatprep.mubr.bf16.mxu0 0
  %1636 = vmatmul.mubr.bf16.gmra.mrb[0].mxu0 %v1370
  %v1637 = vpop.f32.mrb[0].mxu0
  %v1638 = vadd.f32 %v1493, %v1637
  %v1639 = vpop.f32.mrb[0].mxu0
  %v1640 = vpop.f32.mrb[0].mxu0
  %v1641 = vadd.f32 %v1496, %v1640
  %v1642 = vpop.f32.mrb[0].mxu0
  %1643 = vmatprep.mubr.bf16.mxu0 0
  %1644 = vmatmul.mubr.bf16.gmra.mrb[0].mxu0 %v1371
  %v1645 = vpop.f32.mrb[0].mxu0
  %v1646 = vadd.f32 %v1501, %v1645
  %v1647 = vpop.f32.mrb[0].mxu0
  %v1648 = vpop.f32.mrb[0].mxu0
  %v1649 = vadd.f32 %v1504, %v1648
  %v1650 = vpop.f32.mrb[0].mxu0
  %1651 = vmatprep.mubr.bf16.mxu0 0
  %1652 = vmatmul.mubr.bf16.gmra.mrb[0].mxu0 %v1372
  %v1653 = vpop.f32.mrb[0].mxu0
  %v1654 = vadd.f32 %v1509, %v1653
  %v1655 = vpop.f32.mrb[0].mxu0
  %v1656 = vpop.f32.mrb[0].mxu0
  %v1657 = vadd.f32 %v1512, %v1656
  %v1658 = vpop.f32.mrb[0].mxu0
  %1659 = vmatprep.mubr.bf16.mxu0 0
  %1660 = vmatmul.mubr.bf16.gmra.mrb[0].mxu0 %v1373
  %v1661 = vpop.f32.mrb[0].mxu0
  %v1662 = vadd.f32 %v1517, %v1661
  %v1663 = vpop.f32.mrb[0].mxu0
  %v1664 = vpop.f32.mrb[0].mxu0
  %v1665 = vadd.f32 %v1520, %v1664
  %v1666 = vpop.f32.mrb[0].mxu0
  %1667 = vmatprep.mubr.bf16.mxu0 0
  %1668 = vmatmul.mubr.bf16.gmra.mrb[0].mxu0 %v1374
  %v1669 = vpop.f32.mrb[0].mxu0
  %v1670 = vadd.f32 %v1525, %v1669
  %v1671 = vpop.f32.mrb[0].mxu0
  %v1672 = vpop.f32.mrb[0].mxu0
  %v1673 = vadd.f32 %v1528, %v1672
  %v1674 = vpop.f32.mrb[0].mxu0
  %1675 = vmatprep.mubr.bf16.mxu0 0
  %1676 = vmatmul.mubr.bf16.gmra.mrb[0].mxu0 %v1375
  %v1677 = vpop.f32.mrb[0].mxu0
  %v1678 = vadd.f32 %v1533, %v1677
  %v1679 = vpop.f32.mrb[0].mxu0
  %v1680 = vpop.f32.mrb[0].mxu0
  %v1681 = vadd.f32 %v1536, %v1680
  %v1682 = vpop.f32.mrb[0].mxu0
  %1683 = vmatprep.mubr.bf16.mxu0 0
  %1684 = vmatmul.mubr.bf16.gmra.mrb[0].mxu0 %v1376
  %v1685 = vpop.f32.mrb[0].mxu0
  %v1686 = vadd.f32 %v1541, %v1685
  %v1687 = vpop.f32.mrb[0].mxu0
  %v1688 = vpop.f32.mrb[0].mxu0
  %v1689 = vadd.f32 %v1544, %v1688
  %v1690 = vpop.f32.mrb[0].mxu0
  %1691 = vmatprep.mubr.bf16.mxu0 0
  %1692 = vmatmul.mubr.bf16.gmra.mrb[0].mxu0 %v1377
  %v1693 = vpop.f32.mrb[0].mxu0
  %v1694 = vadd.f32 %v1549, %v1693
  %v1695 = vpop.f32.mrb[0].mxu0
  %v1696 = vpop.f32.mrb[0].mxu0
  %v1697 = vadd.f32 %v1552, %v1696
  %v1698 = vpop.f32.mrb[0].mxu0
  %1699 = vdwg.mxu0
  %v1700 = vld [vmem:[%s5] sm:$0x1]
  %v1701 = vmul.f32 %v1638, 0.5
  %v1702 = vmul.f32 %v1641, 0.5
  %v1703 = vmul.f32 %v1646, 0.5
  %v1704 = vmul.f32 %v1649, 0.5
  %v1705 = vmul.f32 %v1654, 0.5
  %v1706 = vmul.f32 %v1657, 0.5
  %v1707 = vmul.f32 %v1662, 0.5
  %v1708 = vmul.f32 %v1665, 0.5
  %v1709 = vmul.f32 %v1670, 0.5
  %v1710 = vmul.f32 %v1673, 0.5
  %v1711 = vmul.f32 %v1678, 0.5
  %v1712 = vmul.f32 %v1681, 0.5
  %v1713 = vmul.f32 %v1686, 0.5
  %v1714 = vmul.f32 %v1689, 0.5
  %v1715 = vmul.f32 %v1694, 0.5
  %v1716 = vmul.f32 %v1697, 0.5
  %v1718 = vlaneseq
  %v1719 = vshrl.u32 %v1718, 7
  %v1720 = vsub.s32 0, %v1719
  %v1721 = vrot.slane %v1700, %v1720
  %v1723 = vadd.f32 %v1701, %v1721
  %v1724 = vadd.f32 %v1702, %v1721
  %v1725 = vadd.f32 %v1703, %v1721
  %v1726 = vadd.f32 %v1704, %v1721
  %v1727 = vadd.f32 %v1705, %v1721
  %v1728 = vadd.f32 %v1706, %v1721
  %v1729 = vadd.f32 %v1707, %v1721
  %v1730 = vadd.f32 %v1708, %v1721
  %v1731 = vadd.f32 %v1709, %v1721
  %v1732 = vadd.f32 %v1710, %v1721
  %v1733 = vadd.f32 %v1711, %v1721
  %v1734 = vadd.f32 %v1712, %v1721
  %v1735 = vadd.f32 %v1713, %v1721
  %v1736 = vadd.f32 %v1714, %v1721
  %v1737 = vadd.f32 %v1715, %v1721
  %v1738 = vadd.f32 %v1716, %v1721
  %v1739 = vmul.f32 %v1638, %v1723
  %v1740 = vmul.f32 %v1641, %v1724
  %v1741 = vmul.f32 %v1646, %v1725
  %v1742 = vmul.f32 %v1649, %v1726
  %v1743 = vmul.f32 %v1654, %v1727
  %v1744 = vmul.f32 %v1657, %v1728
  %v1745 = vmul.f32 %v1662, %v1729
  %v1746 = vmul.f32 %v1665, %v1730
  %v1747 = vmul.f32 %v1670, %v1731
  %v1748 = vmul.f32 %v1673, %v1732
  %v1749 = vmul.f32 %v1678, %v1733
  %v1750 = vmul.f32 %v1681, %v1734
  %v1751 = vmul.f32 %v1686, %v1735
  %v1752 = vmul.f32 %v1689, %v1736
  %v1753 = vmul.f32 %v1694, %v1737
  %v1754 = vmul.f32 %v1697, %v1738
  %vm1755 = vcmask 261120
  %v1756 = vsel %vm1755, %v1739, 0.0
  %1757 = vadd.xlane.f32.xlu0 %v1756
  %v1758 = vpop.xlane.xlu0 %1757
  %v1759 = vsel %vm1755, %v1740, 0.0
  %1760 = vadd.xlane.f32.xlu0 %v1759
  %v1761 = vpop.xlane.xlu0 %1760
  %v1762 = vsel %vm1755, %v1741, 0.0
  %1763 = vadd.xlane.f32.xlu0 %v1762
  %v1764 = vpop.xlane.xlu0 %1763
  %v1765 = vsel %vm1755, %v1742, 0.0
  %1766 = vadd.xlane.f32.xlu0 %v1765
  %v1767 = vpop.xlane.xlu0 %1766
  %v1768 = vsel %vm1755, %v1743, 0.0
  %1769 = vadd.xlane.f32.xlu0 %v1768
  %v1770 = vpop.xlane.xlu0 %1769
  %v1771 = vsel %vm1755, %v1744, 0.0
  %1772 = vadd.xlane.f32.xlu0 %v1771
  %v1773 = vpop.xlane.xlu0 %1772
  %v1774 = vsel %vm1755, %v1745, 0.0
  %1775 = vadd.xlane.f32.xlu0 %v1774
  %v1776 = vpop.xlane.xlu0 %1775
  %v1777 = vsel %vm1755, %v1746, 0.0
  %1778 = vadd.xlane.f32.xlu0 %v1777
  %v1779 = vpop.xlane.xlu0 %1778
  %v1780 = vsel %vm1755, %v1747, 0.0
  %1781 = vadd.xlane.f32.xlu0 %v1780
  %v1782 = vpop.xlane.xlu0 %1781
  %v1783 = vsel %vm1755, %v1748, 0.0
  %1784 = vadd.xlane.f32.xlu0 %v1783
  %v1785 = vpop.xlane.xlu0 %1784
  %v1786 = vsel %vm1755, %v1749, 0.0
  %1787 = vadd.xlane.f32.xlu0 %v1786
  %v1788 = vpop.xlane.xlu0 %1787
  %v1789 = vsel %vm1755, %v1750, 0.0
  %1790 = vadd.xlane.f32.xlu0 %v1789
  %v1791 = vpop.xlane.xlu0 %1790
  %v1792 = vsel %vm1755, %v1751, 0.0
  %1793 = vadd.xlane.f32.xlu0 %v1792
  %v1794 = vpop.xlane.xlu0 %1793
  %v1795 = vsel %vm1755, %v1752, 0.0
  %1796 = vadd.xlane.f32.xlu0 %v1795
  %v1797 = vpop.xlane.xlu0 %1796
  %v1798 = vsel %vm1755, %v1753, 0.0
  %1799 = vadd.xlane.f32.xlu0 %v1798
  %v1800 = vpop.xlane.xlu0 %1799
  %v1801 = vsel %vm1755, %v1754, 0.0
  %1802 = vadd.xlane.f32.xlu0 %v1801
  %v1803 = vpop.xlane.xlu0 %1802
  %v1804 = vadd.f32 %v58, %v1758
  %v1805 = vadd.f32 %v59, %v1761
  %v1806 = vadd.f32 %v60, %v1764
  %v1807 = vadd.f32 %v61, %v1767
  %v1808 = vadd.f32 %v62, %v1770
  %v1809 = vadd.f32 %v63, %v1773
  %v1810 = vadd.f32 %v64, %v1776
  %v1811 = vadd.f32 %v65, %v1779
  %v1812 = vadd.f32 %v66, %v1782
  %v1813 = vadd.f32 %v67, %v1785
  %v1814 = vadd.f32 %v68, %v1788
  %v1815 = vadd.f32 %v69, %v1791
  %v1816 = vadd.f32 %v70, %v1794
  %v1817 = vadd.f32 %v71, %v1797
  %v1818 = vadd.f32 %v72, %v1800
  %v1819 = vadd.f32 %v73, %v1803
  %v1820 = vxor.u32 %v1804, 2147483648
  %v1821 = vxor.u32 %v1805, 2147483648
  %v1822 = vxor.u32 %v1806, 2147483648
  %v1823 = vxor.u32 %v1807, 2147483648
  %v1824 = vxor.u32 %v1808, 2147483648
  %v1825 = vxor.u32 %v1809, 2147483648
  %v1826 = vxor.u32 %v1810, 2147483648
  %v1827 = vxor.u32 %v1811, 2147483648
  %v1828 = vxor.u32 %v1812, 2147483648
  %v1829 = vxor.u32 %v1813, 2147483648
  %v1830 = vxor.u32 %v1814, 2147483648
  %v1831 = vxor.u32 %v1815, 2147483648
  %v1832 = vxor.u32 %v1816, 2147483648
  %v1833 = vxor.u32 %v1817, 2147483648
  %v1834 = vxor.u32 %v1818, 2147483648
  %v1835 = vxor.u32 %v1819, 2147483648
  %v1836 = vmul.f32 %v1820, 1.442695
  %v1837 = vpow.pop %v1836
  %v1838 = vmul.f32 %v1821, 1.442695
  %v1839 = vpow.pop %v1838
  %v1840 = vmul.f32 %v1822, 1.442695
  %v1841 = vpow.pop %v1840
  %v1842 = vmul.f32 %v1823, 1.442695
  %v1843 = vpow.pop %v1842
  %v1844 = vmul.f32 %v1824, 1.442695
  %v1845 = vpow.pop %v1844
  %v1846 = vmul.f32 %v1825, 1.442695
  %v1847 = vpow.pop %v1846
  %v1848 = vmul.f32 %v1826, 1.442695
  %v1849 = vpow.pop %v1848
  %v1850 = vmul.f32 %v1827, 1.442695
  %v1851 = vpow.pop %v1850
  %v1852 = vmul.f32 %v1828, 1.442695
  %v1853 = vpow.pop %v1852
  %v1854 = vmul.f32 %v1829, 1.442695
  %v1855 = vpow.pop %v1854
  %v1856 = vmul.f32 %v1830, 1.442695
  %v1857 = vpow.pop %v1856
  %v1858 = vmul.f32 %v1831, 1.442695
  %v1859 = vpow.pop %v1858
  %v1860 = vmul.f32 %v1832, 1.442695
  %v1861 = vpow.pop %v1860
  %v1862 = vmul.f32 %v1833, 1.442695
  %v1863 = vpow.pop %v1862
  %v1864 = vmul.f32 %v1834, 1.442695
  %v1865 = vpow.pop %v1864
  %v1866 = vmul.f32 %v1835, 1.442695
  %v1867 = vpow.pop %v1866
  %v1868 = vadd.f32 %v1837, 1.0
  %v1869 = vadd.f32 %v1839, 1.0
  %v1870 = vadd.f32 %v1841, 1.0
  %v1871 = vadd.f32 %v1843, 1.0
  %v1872 = vadd.f32 %v1845, 1.0
  %v1873 = vadd.f32 %v1847, 1.0
  %v1874 = vadd.f32 %v1849, 1.0
  %v1875 = vadd.f32 %v1851, 1.0
  %v1876 = vadd.f32 %v1853, 1.0
  %v1877 = vadd.f32 %v1855, 1.0
  %v1878 = vadd.f32 %v1857, 1.0
  %v1879 = vadd.f32 %v1859, 1.0
  %v1880 = vadd.f32 %v1861, 1.0
  %v1881 = vadd.f32 %v1863, 1.0
  %v1882 = vadd.f32 %v1865, 1.0
  %v1883 = vadd.f32 %v1867, 1.0
  %v1884 = vrcp.pop %v1868
  %v1885 = vmul.f32 1.0, %v1884
  %v1886 = vrcp.pop %v1869
  %v1887 = vmul.f32 1.0, %v1886
  %v1888 = vrcp.pop %v1870
  %v1889 = vmul.f32 1.0, %v1888
  %v1890 = vrcp.pop %v1871
  %v1891 = vmul.f32 1.0, %v1890
  %v1892 = vrcp.pop %v1872
  %v1893 = vmul.f32 1.0, %v1892
  %v1894 = vrcp.pop %v1873
  %v1895 = vmul.f32 1.0, %v1894
  %v1896 = vrcp.pop %v1874
  %v1897 = vmul.f32 1.0, %v1896
  %v1898 = vrcp.pop %v1875
  %v1899 = vmul.f32 1.0, %v1898
  %v1900 = vrcp.pop %v1876
  %v1901 = vmul.f32 1.0, %v1900
  %v1902 = vrcp.pop %v1877
  %v1903 = vmul.f32 1.0, %v1902
  %v1904 = vrcp.pop %v1878
  %v1905 = vmul.f32 1.0, %v1904
  %v1906 = vrcp.pop %v1879
  %v1907 = vmul.f32 1.0, %v1906
  %v1908 = vrcp.pop %v1880
  %v1909 = vmul.f32 1.0, %v1908
  %v1910 = vrcp.pop %v1881
  %v1911 = vmul.f32 1.0, %v1910
  %v1912 = vrcp.pop %v1882
  %v1913 = vmul.f32 1.0, %v1912
  %v1914 = vrcp.pop %v1883
  %v1915 = vmul.f32 1.0, %v1914
  %vm1916 = vcmask 7168
  %1917 = vst.msk [vmem:[%s6] sm:$0xff] %vm1916, %v1885
  %1918 = vst.msk [vmem:[%s6 + $0x8] sm:$0xff] %vm1916, %v1887
  %1919 = vst.msk [vmem:[%s6 + $0x10] sm:$0xff] %vm1916, %v1889
  %1920 = vst.msk [vmem:[%s6 + $0x18] sm:$0xff] %vm1916, %v1891
  %1921 = vst.msk [vmem:[%s6 + $0x20] sm:$0xff] %vm1916, %v1893
  %1922 = vst.msk [vmem:[%s6 + $0x28] sm:$0xff] %vm1916, %v1895
  %1923 = vst.msk [vmem:[%s6 + $0x30] sm:$0xff] %vm1916, %v1897
  %1924 = vst.msk [vmem:[%s6 + $0x38] sm:$0xff] %vm1916, %v1899
  %1925 = vst.msk [vmem:[%s6 + $0x40] sm:$0xff] %vm1916, %v1901
  %1926 = vst.msk [vmem:[%s6 + $0x48] sm:$0xff] %vm1916, %v1903
  %1927 = vst.msk [vmem:[%s6 + $0x50] sm:$0xff] %vm1916, %v1905
  %1928 = vst.msk [vmem:[%s6 + $0x58] sm:$0xff] %vm1916, %v1907
  %1929 = vst.msk [vmem:[%s6 + $0x60] sm:$0xff] %vm1916, %v1909
  %1930 = vst.msk [vmem:[%s6 + $0x68] sm:$0xff] %vm1916, %v1911
  %1931 = vst.msk [vmem:[%s6 + $0x70] sm:$0xff] %vm1916, %v1913
  %1932 = vst.msk [vmem:[%s6 + $0x78] sm:$0xff] %vm1916, %v1915
  // Predicated region
  $region26: #{fm_forward.1} parent=0 // pred_check
    _
  $region27: #{fm_forward.1} parent=0 // pred_check_branch
    %1934 = sbr.rel (0) target = $region29
  $region28: #{fm_forward.1} parent=0 // pred_region
    _
  $region29: #{fm_forward.1} parent=0 // pred_fallthru
    _
  // Predicated region
  $region30: #{fm_forward.1} parent=0 // pred_check
    _
  $region31: #{fm_forward.1} parent=0 // pred_check_branch
    %1936 = sbr.rel (0) target = $region33
  $region32: #{fm_forward.1} parent=0 // pred_region
    _
  $region33: #{fm_forward.1} parent=0 // pred_fallthru
    _

</llo_original>
